<compile_context>
chip_gen: v7x
topology: tpu7x:2x2x1
jax: 0.10.0
libtpu: 0.0.40
codegen_flags: <defaults>
</compile_context>

<pallas_src>
import numpy as np
import jax
import jax.numpy as jnp
from jax.experimental import pallas as pl
from jax.experimental.pallas import tpu as pltpu

# ---- model dims implied by the module (x.view(-1, 250) => 1x28x28 input) ----
B = 2
IN_H = IN_W = 28
C1 = 5                  # conv1 out channels
C2 = 10                 # conv2 out channels
K = 3                   # kernel size
H1 = IN_H - K + 1       # 26  (conv1 output)
P1 = H1 // 2            # 13  (pool1 output)
H2 = P1 - K + 1         # 11  (conv2 output)
P2 = H2 // 2            # 5   (pool2 output, floor)
NFEAT = C2 * P2 * P2    # 250
NCLS = 10
OUT_W = 128             # lane-padded logits / output row width

DEF = jax.lax.Precision.DEFAULT

# ---- static layout of the packed constant slab (8-aligned row offsets) ----
SLAB_W = B * C1 * H1    # 260 (widest constant)


def _pad8(n):
    return -(-n // 8) * 8


_SLAB_ENTRIES = (
    ("band1_0", (B * IN_W, B * C1 * H1)),       # (56, 260)
    ("band1_1", (B * IN_W, B * C1 * H1)),
    ("band1_2", (B * IN_W, B * C1 * H1)),
    ("b1",      (1, B * C1 * H1)),              # (1, 260)
    ("Sr1",     (P1, H1 - 1)),                  # (13, 25)
    ("Sc1",     (B * C1 * H1 - 1, B * C1 * P1)),  # (259, 130)
    ("band2_0", (B * C1 * P1, B * C2 * H2)),    # (130, 220)
    ("band2_1", (B * C1 * P1, B * C2 * H2)),
    ("band2_2", (B * C1 * P1, B * C2 * H2)),
    ("b2",      (1, B * C2 * H2)),              # (1, 220)
    ("bfc",     (1, OUT_W)),                    # (1, 128)
)
SLAB_LAYOUT = {}
_row = 0
for _name, (_r, _c) in _SLAB_ENTRIES:
    SLAB_LAYOUT[_name] = (_row, _r, _c)
    _row += _pad8(_r)
SLAB_ROWS = _pad8(_row)                         # 880


def classifier_kernel(x_ref, slab_ref, wfc_ref, out_ref):
    f32 = jnp.float32

    def mm(a, b):
        # Precision.DEFAULT: one bf16 MXU pass per dot (perf review item #1).
        return jnp.dot(a, b, precision=DEF, preferred_element_type=f32)

    def cst(name):
        r0, nr, nc = SLAB_LAYOUT[name]
        return slab_ref[r0:r0 + nr, 0:nc]       # static window load from slab

    x = x_ref[...]                                            # (28, 56)

    # ---- conv1: 3 banded matmuls; lanes = b*130 + oc*26 + col ----
    h = mm(x[0:H1, :], cst("band1_0"))
    h = h + mm(x[1:H1 + 1, :], cst("band1_1"))
    h = h + mm(x[2:H1 + 2, :], cst("band1_2"))
    h = h + cst("b1")                                         # (26, 260)

    # ---- maxpool 2x2 + relu (selection matmuls pick even rows / even lanes) ----
    m = jnp.maximum(jnp.maximum(h[:-1, :-1], h[1:, :-1]),
                    jnp.maximum(h[:-1, 1:], h[1:, 1:]))       # (25, 259)
    h1 = jnp.maximum(mm(mm(cst("Sr1"), m), cst("Sc1")), 0.0)  # (13, 130)

    # ---- conv2: 3 banded matmuls; lanes = b*110 + oc*11 + col ----
    # TODO(synk): Dropout2d(p=0.4) is identity in inference mode; training-mode
    # stochastic channel dropout is not implemented.
    g = mm(h1[0:H2, :], cst("band2_0"))
    g = g + mm(h1[1:H2 + 1, :], cst("band2_1"))
    g = g + mm(h1[2:H2 + 2, :], cst("band2_2"))
    g = g + cst("b2")                                         # (11, 220)

    # ---- maxpool 2x2 + relu; the one-hot row/col selection is folded into the
    #      fc weight slabs host-side, so only the shifted max + relu stay here ----
    m2 = jnp.maximum(jnp.maximum(g[:-1, :-1], g[1:, :-1]),
                     jnp.maximum(g[:-1, 1:], g[1:, 1:]))      # (10, 219)
    r = jnp.maximum(m2, 0.0)

    # ---- fc1: 5 independent (1,219)x(219,128) matmuls, tree-added ----
    p0 = mm(r[0:1, :], wfc_ref[0])
    p1 = mm(r[2:3, :], wfc_ref[1])
    p2 = mm(r[4:5, :], wfc_ref[2])
    p3 = mm(r[6:7, :], wfc_ref[3])
    p4 = mm(r[8:9, :], wfc_ref[4])
    logits = cst("bfc") + ((p0 + p1) + (p2 + p3) + p4)        # (1, 128)

    # ---- per-image softmax over each 10-lane class block (exact f32 denom) ----
    lane = jax.lax.broadcasted_iota(jnp.int32, (1, OUT_W), 1)
    m0 = jnp.max(logits[:, 0:NCLS], axis=-1, keepdims=True)
    m1 = jnp.max(logits[:, NCLS:2 * NCLS], axis=-1, keepdims=True)
    e = jnp.exp(logits - jnp.where(lane < NCLS, m0, m1))
    d0 = jnp.sum(e[:, 0:NCLS], axis=-1, keepdims=True)
    d1 = jnp.sum(e[:, NCLS:2 * NCLS], axis=-1, keepdims=True)
    out_ref[...] = e / jnp.where(lane < NCLS, d0, d1)


def prepare_params(params):
    """One-time host-side packing of all kernel constants (review items #2/#3/#4)."""
    w1, b1, w2, b2, wfc, bfc = [np.asarray(p, dtype=np.float32) for p in params]
    eye_b = np.eye(B, dtype=np.float32)

    # conv1 banded weights (K, B*28, B*C1*26), block-diagonal over batch
    sel1 = np.zeros((K, IN_W, H1), np.float32)
    for kj in range(K):
        for j in range(H1):
            sel1[kj, j + kj, j] = 1.0
    band1_img = np.einsum("oab,brc->aroc", w1[:, 0], sel1).reshape(K, IN_W, C1 * H1)
    band1 = np.einsum("bB,krc->kbrBc", eye_b, band1_img)
    band1 = band1.reshape(K, B * IN_W, B * C1 * H1)               # (3, 56, 260)
    b1bc = np.tile(np.repeat(b1, H1), B).reshape(1, B * C1 * H1)

    # pool1 selectors (even rows / even in-block lanes)
    Sr1 = np.zeros((P1, H1 - 1), np.float32)
    for i in range(P1):
        Sr1[i, 2 * i] = 1.0
    Sc1 = np.zeros((B * C1 * H1 - 1, B * C1 * P1), np.float32)    # (259, 130)
    for b in range(B):
        for oc in range(C1):
            for j in range(P1):
                Sc1[b * C1 * H1 + oc * H1 + 2 * j, b * C1 * P1 + oc * P1 + j] = 1.0

    # conv2 banded weights (K, B*65, B*C2*11), block-diagonal over batch
    sel2 = np.zeros((K, P1, H2), np.float32)
    for kj in range(K):
        for j in range(H2):
            sel2[kj, j + kj, j] = 1.0
    band2_img = np.einsum("oiab,brc->airoc", w2, sel2).reshape(K, C1 * P1, C2 * H2)
    band2 = np.einsum("bB,krc->kbrBc", eye_b, band2_img)
    band2 = band2.reshape(K, B * C1 * P1, B * C2 * H2)            # (3, 130, 220)
    b2bc = np.tile(np.repeat(b2, H2), B).reshape(1, B * C2 * H2)

    # pool2 column selector -- folded into the fc weights (review item #4)
    Sc2 = np.zeros((B * C2 * H2 - 1, B * C2 * P2), np.float32)    # (219, 100)
    for b in range(B):
        for oc in range(C2):
            for j in range(P2):
                Sc2[b * C2 * H2 + oc * H2 + 2 * j, b * C2 * P2 + oc * P2 + j] = 1.0

    # fc weights: per pooled-row slabs, block-diag over batch, pool2 selection
    # folded in, class dim zero-padded to 128 lanes (unmasked output store).
    # torch flatten order is (c, h, w): flat = c*25 + h*5 + w
    wfc_hcn = np.transpose(wfc.reshape(NCLS, C2, P2, P2),
                           (2, 1, 3, 0)).reshape(P2, C2 * P2, NCLS)   # (5, 50, 10)
    wfc_k = np.einsum("bB,hcn->hbcBn", eye_b, wfc_hcn)
    wfc_k = wfc_k.reshape(P2, B * C2 * P2, B * NCLS)              # (5, 100, 20)
    wfc_fold = np.einsum("rc,hcn->hrn", Sc2, wfc_k)               # (5, 219, 20)
    wfc_slab = np.zeros((P2, B * C2 * H2 - 1, OUT_W), np.float32)
    wfc_slab[:, :, :B * NCLS] = wfc_fold

    bfc_pad = np.zeros((1, OUT_W), np.float32)
    bfc_pad[0, :B * NCLS] = np.tile(bfc, B)

    # pack all conv/pool constants + biases into one slab -> 3 input DMAs total
    pieces = {
        "band1_0": band1[0], "band1_1": band1[1], "band1_2": band1[2], "b1": b1bc,
        "Sr1": Sr1, "Sc1": Sc1,
        "band2_0": band2[0], "band2_1": band2[1], "band2_2": band2[2], "b2": b2bc,
        "bfc": bfc_pad,
    }
    slab = np.zeros((SLAB_ROWS, SLAB_W), np.float32)
    for name, arr in pieces.items():
        r0, nr, nc = SLAB_LAYOUT[name]
        assert arr.shape == (nr, nc), (name, arr.shape, (nr, nc))
        slab[r0:r0 + nr, :nc] = arr

    return jnp.asarray(slab), jnp.asarray(wfc_slab)


@jax.jit
def classifier_forward(x, prepared):
    slab, wfc_slab = prepared
    # both images side by side along lanes: (28, B*28) -- layout plumbing only
    x2 = jnp.transpose(x[:, 0].astype(jnp.float32), (1, 0, 2)).reshape(IN_H, B * IN_W)
    out = pl.pallas_call(
        classifier_kernel,
        out_shape=jax.ShapeDtypeStruct((1, OUT_W), jnp.float32),
        in_specs=[pl.BlockSpec(memory_space=pltpu.MemorySpace.VMEM)] * 3,
        out_specs=pl.BlockSpec(memory_space=pltpu.MemorySpace.VMEM),
    )(x2, slab, wfc_slab)
    # lane-dense (1, 128) kernel output -> (B, 10)
    return out[0, :B * NCLS].reshape(B, NCLS)


def init_params(key):
    ks = jax.random.split(key, 6)

    def u(k, shape, fan_in):
        bound = 1.0 / jnp.sqrt(jnp.float32(fan_in))
        return jax.random.uniform(k, shape, jnp.float32, -bound, bound)

    w1 = u(ks[0], (C1, 1, K, K), 1 * K * K)
    b1 = u(ks[1], (C1,), 1 * K * K)
    w2 = u(ks[2], (C2, C1, K, K), C1 * K * K)
    b2 = u(ks[3], (C2,), C1 * K * K)
    wfc = u(ks[4], (NCLS, NFEAT), NFEAT)
    bfc = u(ks[5], (NCLS,), NFEAT)
    return w1, b1, w2, b2, wfc, bfc


def reference_forward(x, params):
    """Pure-JAX reference mirroring the PyTorch forward (eval mode)."""
    w1, b1, w2, b2, wfc, bfc = params
    Bn = x.shape[0]
    h = jnp.zeros((Bn, C1, H1, H1), jnp.float32) + b1.reshape(1, C1, 1, 1)
    for ki in range(K):
        for kj in range(K):
            h = h + x[:, :, ki:ki + H1, kj:kj + H1] * w1[:, 0, ki, kj].reshape(1, C1, 1, 1)
    h = h.reshape(Bn, C1, P1, 2, P1, 2).max(axis=(3, 5))
    h = jnp.maximum(h, 0.0)

    g = jnp.zeros((Bn, C2, H2, H2), jnp.float32) + b2.reshape(1, C2, 1, 1)
    for ic in range(C1):
        for ki in range(K):
            for kj in range(K):
                g = g + h[:, ic:ic + 1, ki:ki + H2, kj:kj + H2] * \
                    w2[:, ic, ki, kj].reshape(1, C2, 1, 1)
    g = g[:, :, :2 * P2, :2 * P2].reshape(Bn, C2, P2, 2, P2, 2).max(axis=(3, 5))
    g = jnp.maximum(g, 0.0)

    flat = g.reshape(Bn, NFEAT)
    logits = jnp.dot(flat, wfc.T, precision=jax.lax.Precision.HIGHEST) + bfc
    z = logits - jnp.max(logits, axis=1, keepdims=True)
    e = jnp.exp(z)
    return e / jnp.sum(e, axis=1, keepdims=True)


if __name__ == "__main__":
    key = jax.random.PRNGKey(0)
    kx, kp = jax.random.split(key)
    x = jax.random.normal(kx, (B, 1, IN_H, IN_W), dtype=jnp.float32)
    params = init_params(kp)

    prepared = prepare_params(params)          # one-time constant packing
    out = classifier_forward(x, prepared)
    out = jax.block_until_ready(out)

    ref = reference_forward(x, params)
    assert out.shape == (B, NCLS)
    # per-block denominators are exact f32, so rows sum to 1 up to f32 rounding
    assert bool(jnp.allclose(jnp.sum(out, axis=1), 1.0, atol=1e-3))
    # MXU matmuls now run single-pass bf16 (Precision.DEFAULT); tolerance sized
    # for bf16 operand rounding while still catching any layout/indexing bug.
    assert bool(jnp.allclose(out, ref, atol=5e-3, rtol=2e-2))
    print("KERNEL_OK")
</pallas_src>

<mosaic_0001>
module attributes {stable_mosaic.version = 11 : i64} {
  func.func @classifier_kernel(%arg0: memref<28x56xf32, #tpu.memory_space<vmem>>, %arg1: memref<880x260xf32, #tpu.memory_space<vmem>>, %arg2: memref<5x219x128xf32, #tpu.memory_space<vmem>>, %arg3: memref<1x128xf32, #tpu.memory_space<vmem>>) attributes {dimension_semantics = [], scalar_prefetch = 0 : i64, scratch_operands = 0 : i64, tpu.core_type = #tpu.core_type<tc>} {
    %c0 = arith.constant 0 : index
    %c0_0 = arith.constant 0 : index
    %0 = vector.load %arg0[%c0, %c0_0] : memref<28x56xf32, #tpu.memory_space<vmem>>, vector<28x56xf32>
    %1 = vector.extract_strided_slice %0 {offsets = [0, 0], sizes = [26, 56], strides = [1, 1]} : vector<28x56xf32> to vector<26x56xf32>
    %c0_1 = arith.constant 0 : index
    %c0_2 = arith.constant 0 : index
    %2 = vector.load %arg1[%c0_1, %c0_2] : memref<880x260xf32, #tpu.memory_space<vmem>>, vector<56x260xf32>
    %cst = arith.constant dense<0.000000e+00> : vector<26x260xf32>
    %3 = tpu.matmul %1, %2, %cst {dimension_numbers = #tpu.dot_dimension_numbers<[1], [0], [0], [1], [0, 0, 1, 1], [], []>} : vector<26x56xf32>, vector<56x260xf32>, vector<26x260xf32> -> vector<26x260xf32>
    %4 = vector.extract_strided_slice %0 {offsets = [1, 0], sizes = [26, 56], strides = [1, 1]} : vector<28x56xf32> to vector<26x56xf32>
    %c56 = arith.constant 56 : index
    %c0_3 = arith.constant 0 : index
    %5 = vector.load %arg1[%c56, %c0_3] : memref<880x260xf32, #tpu.memory_space<vmem>>, vector<56x260xf32>
    %cst_4 = arith.constant dense<0.000000e+00> : vector<26x260xf32>
    %6 = tpu.matmul %4, %5, %cst_4 {dimension_numbers = #tpu.dot_dimension_numbers<[1], [0], [0], [1], [0, 0, 1, 1], [], []>} : vector<26x56xf32>, vector<56x260xf32>, vector<26x260xf32> -> vector<26x260xf32>
    %7 = arith.addf %3, %6 : vector<26x260xf32>
    %8 = vector.extract_strided_slice %0 {offsets = [2, 0], sizes = [26, 56], strides = [1, 1]} : vector<28x56xf32> to vector<26x56xf32>
    %c112 = arith.constant 112 : index
    %c0_5 = arith.constant 0 : index
    %9 = vector.load %arg1[%c112, %c0_5] : memref<880x260xf32, #tpu.memory_space<vmem>>, vector<56x260xf32>
    %cst_6 = arith.constant dense<0.000000e+00> : vector<26x260xf32>
    %10 = tpu.matmul %8, %9, %cst_6 {dimension_numbers = #tpu.dot_dimension_numbers<[1], [0], [0], [1], [0, 0, 1, 1], [], []>} : vector<26x56xf32>, vector<56x260xf32>, vector<26x260xf32> -> vector<26x260xf32>
    %11 = arith.addf %7, %10 : vector<26x260xf32>
    %c168 = arith.constant 168 : index
    %c0_7 = arith.constant 0 : index
    %12 = vector.load %arg1[%c168, %c0_7] : memref<880x260xf32, #tpu.memory_space<vmem>>, vector<1x260xf32>
    %13 = vector.broadcast %12 : vector<1x260xf32> to vector<26x260xf32>
    %14 = arith.addf %11, %13 : vector<26x260xf32>
    %15 = vector.extract_strided_slice %14 {offsets = [0, 0], sizes = [25, 259], strides = [1, 1]} : vector<26x260xf32> to vector<25x259xf32>
    %16 = vector.extract_strided_slice %14 {offsets = [1, 0], sizes = [25, 259], strides = [1, 1]} : vector<26x260xf32> to vector<25x259xf32>
    %17 = arith.maximumf %15, %16 : vector<25x259xf32>
    %18 = vector.extract_strided_slice %14 {offsets = [0, 1], sizes = [25, 259], strides = [1, 1]} : vector<26x260xf32> to vector<25x259xf32>
    %19 = vector.extract_strided_slice %14 {offsets = [1, 1], sizes = [25, 259], strides = [1, 1]} : vector<26x260xf32> to vector<25x259xf32>
    %20 = arith.maximumf %18, %19 : vector<25x259xf32>
    %21 = arith.maximumf %17, %20 : vector<25x259xf32>
    %c176 = arith.constant 176 : index
    %c0_8 = arith.constant 0 : index
    %22 = vector.load %arg1[%c176, %c0_8] : memref<880x260xf32, #tpu.memory_space<vmem>>, vector<13x25xf32>
    %cst_9 = arith.constant dense<0.000000e+00> : vector<13x259xf32>
    %23 = tpu.matmul %22, %21, %cst_9 {dimension_numbers = #tpu.dot_dimension_numbers<[1], [0], [0], [1], [0, 0, 1, 1], [], []>} : vector<13x25xf32>, vector<25x259xf32>, vector<13x259xf32> -> vector<13x259xf32>
    %c192 = arith.constant 192 : index
    %c0_10 = arith.constant 0 : index
    %24 = vector.load %arg1[%c192, %c0_10] : memref<880x260xf32, #tpu.memory_space<vmem>>, vector<259x130xf32>
    %cst_11 = arith.constant dense<0.000000e+00> : vector<13x130xf32>
    %25 = tpu.matmul %23, %24, %cst_11 {dimension_numbers = #tpu.dot_dimension_numbers<[1], [0], [0], [1], [0, 0, 1, 1], [], []>} : vector<13x259xf32>, vector<259x130xf32>, vector<13x130xf32> -> vector<13x130xf32>
    %cst_12 = arith.constant 0.000000e+00 : f32
    %26 = vector.broadcast %cst_12 : f32 to vector<13x130xf32>
    %27 = arith.maximumf %25, %26 : vector<13x130xf32>
    %28 = vector.extract_strided_slice %27 {offsets = [0, 0], sizes = [11, 130], strides = [1, 1]} : vector<13x130xf32> to vector<11x130xf32>
    %c456 = arith.constant 456 : index
    %c0_13 = arith.constant 0 : index
    %29 = vector.load %arg1[%c456, %c0_13] : memref<880x260xf32, #tpu.memory_space<vmem>>, vector<130x220xf32>
    %cst_14 = arith.constant dense<0.000000e+00> : vector<11x220xf32>
    %30 = tpu.matmul %28, %29, %cst_14 {dimension_numbers = #tpu.dot_dimension_numbers<[1], [0], [0], [1], [0, 0, 1, 1], [], []>} : vector<11x130xf32>, vector<130x220xf32>, vector<11x220xf32> -> vector<11x220xf32>
    %31 = vector.extract_strided_slice %27 {offsets = [1, 0], sizes = [11, 130], strides = [1, 1]} : vector<13x130xf32> to vector<11x130xf32>
    %c592 = arith.constant 592 : index
    %c0_15 = arith.constant 0 : index
    %32 = vector.load %arg1[%c592, %c0_15] : memref<880x260xf32, #tpu.memory_space<vmem>>, vector<130x220xf32>
    %cst_16 = arith.constant dense<0.000000e+00> : vector<11x220xf32>
    %33 = tpu.matmul %31, %32, %cst_16 {dimension_numbers = #tpu.dot_dimension_numbers<[1], [0], [0], [1], [0, 0, 1, 1], [], []>} : vector<11x130xf32>, vector<130x220xf32>, vector<11x220xf32> -> vector<11x220xf32>
    %34 = arith.addf %30, %33 : vector<11x220xf32>
    %35 = vector.extract_strided_slice %27 {offsets = [2, 0], sizes = [11, 130], strides = [1, 1]} : vector<13x130xf32> to vector<11x130xf32>
    %c728 = arith.constant 728 : index
    %c0_17 = arith.constant 0 : index
    %36 = vector.load %arg1[%c728, %c0_17] : memref<880x260xf32, #tpu.memory_space<vmem>>, vector<130x220xf32>
    %cst_18 = arith.constant dense<0.000000e+00> : vector<11x220xf32>
    %37 = tpu.matmul %35, %36, %cst_18 {dimension_numbers = #tpu.dot_dimension_numbers<[1], [0], [0], [1], [0, 0, 1, 1], [], []>} : vector<11x130xf32>, vector<130x220xf32>, vector<11x220xf32> -> vector<11x220xf32>
    %38 = arith.addf %34, %37 : vector<11x220xf32>
    %c864 = arith.constant 864 : index
    %c0_19 = arith.constant 0 : index
    %39 = vector.load %arg1[%c864, %c0_19] : memref<880x260xf32, #tpu.memory_space<vmem>>, vector<1x220xf32>
    %40 = vector.broadcast %39 : vector<1x220xf32> to vector<11x220xf32>
    %41 = arith.addf %38, %40 : vector<11x220xf32>
    %42 = vector.extract_strided_slice %41 {offsets = [0, 0], sizes = [10, 219], strides = [1, 1]} : vector<11x220xf32> to vector<10x219xf32>
    %43 = vector.extract_strided_slice %41 {offsets = [1, 0], sizes = [10, 219], strides = [1, 1]} : vector<11x220xf32> to vector<10x219xf32>
    %44 = arith.maximumf %42, %43 : vector<10x219xf32>
    %45 = vector.extract_strided_slice %41 {offsets = [0, 1], sizes = [10, 219], strides = [1, 1]} : vector<11x220xf32> to vector<10x219xf32>
    %46 = vector.extract_strided_slice %41 {offsets = [1, 1], sizes = [10, 219], strides = [1, 1]} : vector<11x220xf32> to vector<10x219xf32>
    %47 = arith.maximumf %45, %46 : vector<10x219xf32>
    %48 = arith.maximumf %44, %47 : vector<10x219xf32>
    %cst_20 = arith.constant 0.000000e+00 : f32
    %49 = vector.broadcast %cst_20 : f32 to vector<10x219xf32>
    %50 = arith.maximumf %48, %49 : vector<10x219xf32>
    %51 = vector.extract_strided_slice %50 {offsets = [0, 0], sizes = [1, 219], strides = [1, 1]} : vector<10x219xf32> to vector<1x219xf32>
    %c0_21 = arith.constant 0 : index
    %c0_22 = arith.constant 0 : index
    %c0_23 = arith.constant 0 : index
    %52 = vector.load %arg2[%c0_21, %c0_22, %c0_23] : memref<5x219x128xf32, #tpu.memory_space<vmem>>, vector<1x219x128xf32>
    %53 = vector.shape_cast %52 : vector<1x219x128xf32> to vector<219x128xf32>
    %cst_24 = arith.constant dense<0.000000e+00> : vector<1x128xf32>
    %54 = tpu.matmul %51, %53, %cst_24 {dimension_numbers = #tpu.dot_dimension_numbers<[1], [0], [0], [1], [0, 0, 1, 1], [], []>} : vector<1x219xf32>, vector<219x128xf32>, vector<1x128xf32> -> vector<1x128xf32>
    %55 = vector.extract_strided_slice %50 {offsets = [2, 0], sizes = [1, 219], strides = [1, 1]} : vector<10x219xf32> to vector<1x219xf32>
    %c1 = arith.constant 1 : index
    %c0_25 = arith.constant 0 : index
    %c0_26 = arith.constant 0 : index
    %56 = vector.load %arg2[%c1, %c0_25, %c0_26] : memref<5x219x128xf32, #tpu.memory_space<vmem>>, vector<1x219x128xf32>
    %57 = vector.shape_cast %56 : vector<1x219x128xf32> to vector<219x128xf32>
    %cst_27 = arith.constant dense<0.000000e+00> : vector<1x128xf32>
    %58 = tpu.matmul %55, %57, %cst_27 {dimension_numbers = #tpu.dot_dimension_numbers<[1], [0], [0], [1], [0, 0, 1, 1], [], []>} : vector<1x219xf32>, vector<219x128xf32>, vector<1x128xf32> -> vector<1x128xf32>
    %59 = vector.extract_strided_slice %50 {offsets = [4, 0], sizes = [1, 219], strides = [1, 1]} : vector<10x219xf32> to vector<1x219xf32>
    %c2 = arith.constant 2 : index
    %c0_28 = arith.constant 0 : index
    %c0_29 = arith.constant 0 : index
    %60 = vector.load %arg2[%c2, %c0_28, %c0_29] : memref<5x219x128xf32, #tpu.memory_space<vmem>>, vector<1x219x128xf32>
    %61 = vector.shape_cast %60 : vector<1x219x128xf32> to vector<219x128xf32>
    %cst_30 = arith.constant dense<0.000000e+00> : vector<1x128xf32>
    %62 = tpu.matmul %59, %61, %cst_30 {dimension_numbers = #tpu.dot_dimension_numbers<[1], [0], [0], [1], [0, 0, 1, 1], [], []>} : vector<1x219xf32>, vector<219x128xf32>, vector<1x128xf32> -> vector<1x128xf32>
    %63 = vector.extract_strided_slice %50 {offsets = [6, 0], sizes = [1, 219], strides = [1, 1]} : vector<10x219xf32> to vector<1x219xf32>
    %c3 = arith.constant 3 : index
    %c0_31 = arith.constant 0 : index
    %c0_32 = arith.constant 0 : index
    %64 = vector.load %arg2[%c3, %c0_31, %c0_32] : memref<5x219x128xf32, #tpu.memory_space<vmem>>, vector<1x219x128xf32>
    %65 = vector.shape_cast %64 : vector<1x219x128xf32> to vector<219x128xf32>
    %cst_33 = arith.constant dense<0.000000e+00> : vector<1x128xf32>
    %66 = tpu.matmul %63, %65, %cst_33 {dimension_numbers = #tpu.dot_dimension_numbers<[1], [0], [0], [1], [0, 0, 1, 1], [], []>} : vector<1x219xf32>, vector<219x128xf32>, vector<1x128xf32> -> vector<1x128xf32>
    %67 = vector.extract_strided_slice %50 {offsets = [8, 0], sizes = [1, 219], strides = [1, 1]} : vector<10x219xf32> to vector<1x219xf32>
    %c4 = arith.constant 4 : index
    %c0_34 = arith.constant 0 : index
    %c0_35 = arith.constant 0 : index
    %68 = vector.load %arg2[%c4, %c0_34, %c0_35] : memref<5x219x128xf32, #tpu.memory_space<vmem>>, vector<1x219x128xf32>
    %69 = vector.shape_cast %68 : vector<1x219x128xf32> to vector<219x128xf32>
    %cst_36 = arith.constant dense<0.000000e+00> : vector<1x128xf32>
    %70 = tpu.matmul %67, %69, %cst_36 {dimension_numbers = #tpu.dot_dimension_numbers<[1], [0], [0], [1], [0, 0, 1, 1], [], []>} : vector<1x219xf32>, vector<219x128xf32>, vector<1x128xf32> -> vector<1x128xf32>
    %c872 = arith.constant 872 : index
    %c0_37 = arith.constant 0 : index
    %71 = vector.load %arg1[%c872, %c0_37] : memref<880x260xf32, #tpu.memory_space<vmem>>, vector<1x128xf32>
    %72 = arith.addf %54, %58 : vector<1x128xf32>
    %73 = arith.addf %62, %66 : vector<1x128xf32>
    %74 = arith.addf %72, %73 : vector<1x128xf32>
    %75 = arith.addf %74, %70 : vector<1x128xf32>
    %76 = arith.addf %71, %75 : vector<1x128xf32>
    %77 = tpu.iota {dimensions = array<i32: 1>} : vector<1x128xi32>
    %78 = vector.extract_strided_slice %76 {offsets = [0, 0], sizes = [1, 10], strides = [1, 1]} : vector<1x128xf32> to vector<1x10xf32>
    %cst_38 = arith.constant dense<0xFF800000> : vector<1xf32>
    %79 = vector.multi_reduction <maximumf>, %78, %cst_38 [1] : vector<1x10xf32> to vector<1xf32>
    %80 = vector.shape_cast %79 : vector<1xf32> to vector<1x1xf32>
    %81 = vector.extract_strided_slice %76 {offsets = [0, 10], sizes = [1, 10], strides = [1, 1]} : vector<1x128xf32> to vector<1x10xf32>
    %cst_39 = arith.constant dense<0xFF800000> : vector<1xf32>
    %82 = vector.multi_reduction <maximumf>, %81, %cst_39 [1] : vector<1x10xf32> to vector<1xf32>
    %83 = vector.shape_cast %82 : vector<1xf32> to vector<1x1xf32>
    %c10_i32 = arith.constant 10 : i32
    %84 = vector.broadcast %c10_i32 : i32 to vector<1x128xi32>
    %85 = arith.cmpi slt, %77, %84 : vector<1x128xi32>
    %86 = vector.shape_cast %80 : vector<1x1xf32> to vector<1x1xf32>
    %87 = vector.broadcast %86 : vector<1x1xf32> to vector<1x128xf32>
    %88 = vector.shape_cast %83 : vector<1x1xf32> to vector<1x1xf32>
    %89 = vector.broadcast %88 : vector<1x1xf32> to vector<1x128xf32>
    %90 = arith.select %85, %87, %89 : vector<1x128xi1>, vector<1x128xf32>
    %91 = arith.subf %76, %90 : vector<1x128xf32>
    %92 = math.exp %91 : vector<1x128xf32>
    %93 = vector.extract_strided_slice %92 {offsets = [0, 0], sizes = [1, 10], strides = [1, 1]} : vector<1x128xf32> to vector<1x10xf32>
    %cst_40 = arith.constant dense<0.000000e+00> : vector<1xf32>
    %94 = vector.multi_reduction <add>, %93, %cst_40 [1] : vector<1x10xf32> to vector<1xf32>
    %95 = vector.shape_cast %94 : vector<1xf32> to vector<1x1xf32>
    %96 = vector.extract_strided_slice %92 {offsets = [0, 10], sizes = [1, 10], strides = [1, 1]} : vector<1x128xf32> to vector<1x10xf32>
    %cst_41 = arith.constant dense<0.000000e+00> : vector<1xf32>
    %97 = vector.multi_reduction <add>, %96, %cst_41 [1] : vector<1x10xf32> to vector<1xf32>
    %98 = vector.shape_cast %97 : vector<1xf32> to vector<1x1xf32>
    %c10_i32_42 = arith.constant 10 : i32
    %99 = vector.broadcast %c10_i32_42 : i32 to vector<1x128xi32>
    %100 = arith.cmpi slt, %77, %99 : vector<1x128xi32>
    %101 = vector.shape_cast %95 : vector<1x1xf32> to vector<1x1xf32>
    %102 = vector.broadcast %101 : vector<1x1xf32> to vector<1x128xf32>
    %103 = vector.shape_cast %98 : vector<1x1xf32> to vector<1x1xf32>
    %104 = vector.broadcast %103 : vector<1x1xf32> to vector<1x128xf32>
    %105 = arith.select %100, %102, %104 : vector<1x128xi1>, vector<1x128xf32>
    %106 = arith.divf %92, %105 : vector<1x128xf32>
    %c0_43 = arith.constant 0 : index
    %c0_44 = arith.constant 0 : index
    %107 = vector.load %arg3[%c0_43, %c0_44] : memref<1x128xf32, #tpu.memory_space<vmem>>, vector<1x128xf32>
    tpu.vector_store %arg3[%c0_43, %c0_44], %106 {strides = array<i32>} : memref<1x128xf32, #tpu.memory_space<vmem>>, vector<1x128xf32>,
    return
  }
}

</mosaic_0001>

<llo_original>
// kernel: squeeze.3
$region0: #{squeeze.3}
  %s0 = inlined_call_operand.vmem [shape: f32[20], index: 0, kind: input, shape index: {}]
  %s1 = inlined_call_operand.hbm [shape: f32[2,10], index: 1, kind: output, shape index: {}]
  $region1: #{squeeze.3} parent=0
    #allocation0 [shape = 'u8[1024]{0}', space=vmem, size = 0x400, scoped, tag = 'operand span for operand 1']
    #allocation1 [shape = 's32[1]{0}', space=sflag, size = 0x4, scoped, tag = 'scoped memory for squeeze.3']
    #allocation2 [shape = 'u8[4096]{0}', space=vmem, size = 0x1000, scoped, tag = 'scoped mem for output reshape']
    #allocation3 [shape = 'u8[4096]{0}', space=vmem, size = 0x1000, scoped, tag = 'scoped mem for input reshape']
    %2 = vsyncpa [#allocation1], 0
    %s4 = sshllo.u32 0, 1
    %v5 = vld [vmem:[%s0] sm:%s4]
    %6 = vst [vmem:[#allocation3] sm:%s4] %v5
    %v7 = vld [vmem:[#allocation3] sm:$0x1]
    %vm8 = vcmask 80896
    %9 = vst.msk [vmem:[#allocation2] sm:$0x1] %vm8, %v7
    %v10 = vld [vmem:[#allocation3] sm:$0x1]
    %11 = vrot.lane.b32.xlu0 %v10, 118
    %v12 = vpop.permute.xlu0 %11
    %vm13 = vcmask 80896
    %s14 = scalar_lea.vmem [#allocation2], 1
    %15 = vst.msk [vmem:[%s14] sm:$0x1] %vm13, %v12
    %s17 = sshllo.u32 0, 2
    %v19 = vld [vmem:[#allocation2] sm:%s17]
    %s20 = sshllo.u32 0, 2
    %21 = vst [vmem:[#allocation0] sm:%s20] %v19
    %s23 = ssub.s32 32, 32
    %24 = vsyncadd [#allocation1], %s23
    %s26 = sshll.u32 [#allocation0], 4
    %s27 = int_to_ptr.vmem [resolvable:$true] %s26
    %29 = dma.vmem_to_hbm [thread:$0]  %s27, 32, %s1, [#allocation1]
    %30 = dma.done [#allocation1], 32
    %31 = vsyncpa [#allocation1], 1

// kernel: classifier_forward.1
$region0: #{classifier_forward.1}
  #allocation0 [shape = 'u32[]', space=smem, size = 0x4, offset = 0x4, fixed_abs, tag = 'smem constant byte address 0x4 - core index']
  #allocation1 [shape = 'u32[144,128]{1,0:T(1,128)}', space=vmem, size = 0x12000, scoped, tag = 'internal scratch']
  %s0 = inlined_call_operand.vmem [shape: f32[28,56], index: 0, kind: input, shape index: {}]
  %s1 = inlined_call_operand.vmem [shape: f32[880,260], index: 1, kind: input, shape index: {}]
  %s2 = inlined_call_operand.vmem [shape: f32[5,219,128], index: 2, kind: input, shape index: {}]
  %s3 = inlined_call_operand.vmem [shape: f32[1,128], index: 3, kind: output, shape index: {}]
  %s4 = sld [smem:[#allocation0]]
  $region22: #{classifier_forward.1} parent=0
    _
  %s6 = ssub.s32 1, %s4
  %s7 = scalar_select 0, %s6, %s4
  // Predicated region
  $region2: #{classifier_forward.1} parent=0 // pred_check
    _
  $region3: #{classifier_forward.1} parent=0 // pred_check_branch
    %9 = sbr.rel (0) target = $region5
  $region4: #{classifier_forward.1} parent=0 // pred_region
    _
  $region5: #{classifier_forward.1} parent=0 // pred_fallthru
    _
  // Predicated region
  $region6: #{classifier_forward.1} parent=0 // pred_check
    _
  $region7: #{classifier_forward.1} parent=0 // pred_check_branch
    %11 = sbr.rel (0) target = $region9
  $region8: #{classifier_forward.1} parent=0 // pred_region
    _
  $region9: #{classifier_forward.1} parent=0 // pred_fallthru
    _
  // Predicated region
  $region10: #{classifier_forward.1} parent=0 // pred_check
    _
  $region11: #{classifier_forward.1} parent=0 // pred_check_branch
    %13 = sbr.rel (0) target = $region13
  $region12: #{classifier_forward.1} parent=0 // pred_region
    _
  $region13: #{classifier_forward.1} parent=0 // pred_fallthru
    _
  %v14 = vld [vmem:[%s0] sm:$0xff]
  %v15 = vld [vmem:[%s0 + $0x8] sm:$0xff]
  %v16 = vld [vmem:[%s0 + $0x10] sm:$0xff]
  %v17 = vld [vmem:[%s0 + $0x18] sm:$0xf]
  %v18 = vld [vmem:[%s1] sm:$0xff]
  %v19 = vld [vmem:[%s1 + $0x8] sm:$0xff]
  %v20 = vld [vmem:[%s1 + $0x10] sm:$0xff]
  %v21 = vld [vmem:[%s1 + $0x18] sm:$0xff]
  %v22 = vld [vmem:[%s1 + $0x20] sm:$0xff]
  %v23 = vld [vmem:[%s1 + $0x28] sm:$0xff]
  %v24 = vld [vmem:[%s1 + $0x30] sm:$0xff]
  %v25 = vld [vmem:[%s1 + $0x38] sm:$0xff]
  %v26 = vld [vmem:[%s1 + $0x40] sm:$0xff]
  %v27 = vld [vmem:[%s1 + $0x48] sm:$0xff]
  %v28 = vld [vmem:[%s1 + $0x50] sm:$0xff]
  %v29 = vld [vmem:[%s1 + $0x58] sm:$0xff]
  %v30 = vld [vmem:[%s1 + $0x60] sm:$0xff]
  %v31 = vld [vmem:[%s1 + $0x68] sm:$0xff]
  %v32 = vld [vmem:[%s1 + $0x70] sm:$0xff]
  %v33 = vld [vmem:[%s1 + $0x78] sm:$0xff]
  %v34 = vld [vmem:[%s1 + $0x80] sm:$0xff]
  %v35 = vld [vmem:[%s1 + $0x88] sm:$0xff]
  %v36 = vld [vmem:[%s1 + $0x90] sm:$0xff]
  %v37 = vld [vmem:[%s1 + $0x98] sm:$0xff]
  %v38 = vld [vmem:[%s1 + $0xa0] sm:$0xff]
  %v39 = vld [vmem:[%s1 + $0xa8] sm:$0xff]
  %v40 = vld [vmem:[%s1 + $0xb0] sm:$0xff]
  %v41 = vld [vmem:[%s1 + $0xb8] sm:$0xff]
  %v42 = vld [vmem:[%s1 + $0xc0] sm:$0xff]
  %v43 = vld [vmem:[%s1 + $0xc8] sm:$0xff]
  %v44 = vld [vmem:[%s1 + $0xd0] sm:$0xff]
  %v45 = vld [vmem:[%s1 + $0xd8] sm:$0xff]
  %v46 = vld [vmem:[%s1 + $0xe0] sm:$0xff]
  %v47 = vld [vmem:[%s1 + $0xe8] sm:$0xff]
  %v48 = vld [vmem:[%s1 + $0xf0] sm:$0xff]
  %v49 = vld [vmem:[%s1 + $0xf8] sm:$0xff]
  %v50 = vld [vmem:[%s1 + $0x100] sm:$0xff]
  %v51 = vld [vmem:[%s1 + $0x108] sm:$0xff]
  %v52 = vld [vmem:[%s1 + $0x110] sm:$0xff]
  %v53 = vld [vmem:[%s1 + $0x118] sm:$0xff]
  %v54 = vld [vmem:[%s1 + $0x120] sm:$0xff]
  %v55 = vld [vmem:[%s1 + $0x128] sm:$0xff]
  %v56 = vld [vmem:[%s1 + $0x130] sm:$0xff]
  %v57 = vld [vmem:[%s1 + $0x138] sm:$0xff]
  %v58 = vld [vmem:[%s1 + $0x140] sm:$0xff]
  %v59 = vld [vmem:[%s1 + $0x148] sm:$0xff]
  %vm64 = vcmask 1046528
  %v65 = vrot.slane %v14, 1
  %v66 = vrot.slane %v15, 1
  %v67 = vsel %vm64, %v65, %v66
  %v68 = vrot.slane %v16, 1
  %v69 = vsel %vm64, %v66, %v68
  %v70 = vrot.slane %v17, 1
  %v71 = vsel %vm64, %v68, %v70
  %vm72 = vcmask 457728
  %v73 = vsel %vm72, %v67, 0
  %v75 = vsel %vm72, %v69, 0
  %v77 = vsel %vm72, %v71, 0
  %v79 = vsel %vm72, %v70, 0
  %81 = vmatprep.subr.mxu0 %v40
  %82 = vmatpush1.msra.mxu0 %v39
  %83 = vmatprep.subr.mxu0 %v43
  %84 = vmatpush1.msra.mxu0 %v42
  %85 = vmatprep.subr.mxu0 %v46
  %86 = vmatpush1.msra.mxu0 %v45
  %87 = vmatprep.subr.mxu0 %v49
  %88 = vmatpush1.msra.mxu0 %v48
  %89 = vmatprep.subr.mxu0 %v52
  %90 = vmatpush1.msra.mxu0 %v51
  %91 = vmatprep.subr.mxu0 %v55
  %92 = vmatpush1.msra.mxu0 %v54
  %93 = vmatprep.subr.mxu0 %v58
  %94 = vmatpush1.msra.mxu0 %v57
  %95 = vmatprep.subr.mxu0 0.0
  %96 = vmatpush1.msra.mxu0 0.0
  %97 = vmatprep.subr.mxu0 0.0
  %98 = vmatpush1.msra.mxu0 0.0
  %99 = vmatprep.subr.mxu0 0.0
  %100 = vmatpush1.msra.mxu0 0.0
  %101 = vmatprep.subr.mxu0 0.0
  %102 = vmatpush1.msra.mxu0 0.0
  %103 = vmatprep.subr.mxu0 0.0
  %104 = vmatpush1.msra.mxu0 0.0
  %105 = vmatprep.subr.mxu0 0.0
  %106 = vmatpush1.msra.mxu0 0.0
  %107 = vmatprep.subr.mxu0 0.0
  %108 = vmatpush1.msra.mxu0 0.0
  %109 = vmatprep.subr.mxu0 0.0
  %110 = vmatpush1.msra.mxu0 0.0
  %111 = vmatprep.subr.mxu0 0.0
  %112 = vmatpush1.msra.mxu0 0.0
  %113 = vmatprep.subr.mxu0 0.0
  %114 = vmatpush1.msra.mxu0 0.0
  %115 = vmatprep.subr.mxu0 0.0
  %116 = vmatpush1.msra.mxu0 0.0
  %117 = vmatprep.subr.mxu0 0.0
  %118 = vmatpush1.msra.mxu0 0.0
  %119 = vmatprep.subr.mxu0 0.0
  %120 = vmatpush1.msra.mxu0 0.0
  %121 = vmatprep.subr.mxu0 0.0
  %122 = vmatpush1.msra.mxu0 0.0
  %123 = vmatprep.subr.mxu0 0.0
  %124 = vmatpush1.msra.mxu0 0.0
  %125 = vmatprep.subr.mxu0 0.0
  %126 = vmatpush1.msra.mxu0 0.0
  %127 = vmatprep.subr.mxu0 0.0
  %128 = vmatpush1.msra.mxu0 0.0
  %129 = vmatprep.subr.mxu0 0.0
  %130 = vmatpush1.msra.mxu0 0.0
  %131 = vmatprep.subr.mxu0 0.0
  %132 = vmatpush1.msra.mxu0 0.0
  %133 = vmatprep.subr.mxu0 0.0
  %134 = vmatpush1.msra.mxu0 0.0
  %135 = vmatprep.subr.mxu0 0.0
  %136 = vmatpush1.msra.mxu0 0.0
  %137 = vmatprep.subr.mxu0 0.0
  %138 = vmatpush1.msra.mxu0 0.0
  %139 = vmatprep.subr.mxu0 0.0
  %140 = vmatpush1.msra.mxu0 0.0
  %141 = vmatprep.subr.mxu0 0.0
  %142 = vmatpush1.msra.mxu0 0.0
  %143 = vmatprep.subr.mxu0 0.0
  %144 = vmatpush1.msra.mxu0 0.0
  %145 = vmatprep.mubr.f32.mxu0 0.0
  %146 = vmatmul.mubr.f32.gmra.mrb[0].mxu0 %v73
  %v147 = vpop.f32.mrb[0].mxu0
  %v148 = vadd.f32 0.0, %v147
  %v149 = vpop.f32.mrb[0].mxu0
  %v150 = vadd.f32 0.0, %v149
  %151 = vmatprep.mubr.f32.mxu0 0.0
  %152 = vmatmul.mubr.f32.gmra.mrb[0].mxu0 %v75
  %v153 = vpop.f32.mrb[0].mxu0
  %v154 = vadd.f32 0.0, %v153
  %v155 = vpop.f32.mrb[0].mxu0
  %v156 = vadd.f32 0.0, %v155
  %157 = vmatprep.mubr.f32.mxu0 0.0
  %158 = vmatmul.mubr.f32.gmra.mrb[0].mxu0 %v77
  %v159 = vpop.f32.mrb[0].mxu0
  %v160 = vadd.f32 0.0, %v159
  %v161 = vpop.f32.mrb[0].mxu0
  %v162 = vadd.f32 0.0, %v161
  %163 = vmatprep.mubr.f32.mxu0 0.0
  %164 = vmatmul.mubr.f32.gmra.mrb[0].mxu0 %v79
  %v165 = vpop.f32.mrb[0].mxu0
  %v166 = vadd.f32 0.0, %v165
  %v167 = vpop.f32.mrb[0].mxu0
  %v168 = vadd.f32 0.0, %v167
  %169 = vdwg.mxu0
  %170 = vmatprep.subr.mxu0 0.0
  %171 = vmatpush1.msra.mxu0 %v41
  %172 = vmatprep.subr.mxu0 0.0
  %173 = vmatpush1.msra.mxu0 %v44
  %174 = vmatprep.subr.mxu0 0.0
  %175 = vmatpush1.msra.mxu0 %v47
  %176 = vmatprep.subr.mxu0 0.0
  %177 = vmatpush1.msra.mxu0 %v50
  %178 = vmatprep.subr.mxu0 0.0
  %179 = vmatpush1.msra.mxu0 %v53
  %180 = vmatprep.subr.mxu0 0.0
  %181 = vmatpush1.msra.mxu0 %v56
  %182 = vmatprep.subr.mxu0 0.0
  %183 = vmatpush1.msra.mxu0 %v59
  %184 = vmatprep.subr.mxu0 0.0
  %185 = vmatpush1.msra.mxu0 0.0
  %186 = vmatprep.subr.mxu0 0.0
  %187 = vmatpush1.msra.mxu0 0.0
  %188 = vmatprep.subr.mxu0 0.0
  %189 = vmatpush1.msra.mxu0 0.0
  %190 = vmatprep.subr.mxu0 0.0
  %191 = vmatpush1.msra.mxu0 0.0
  %192 = vmatprep.subr.mxu0 0.0
  %193 = vmatpush1.msra.mxu0 0.0
  %194 = vmatprep.subr.mxu0 0.0
  %195 = vmatpush1.msra.mxu0 0.0
  %196 = vmatprep.subr.mxu0 0.0
  %197 = vmatpush1.msra.mxu0 0.0
  %198 = vmatprep.subr.mxu0 0.0
  %199 = vmatpush1.msra.mxu0 0.0
  %200 = vmatprep.subr.mxu0 0.0
  %201 = vmatpush1.msra.mxu0 0.0
  %202 = vmatprep.subr.mxu0 0.0
  %203 = vmatpush1.msra.mxu0 0.0
  %204 = vmatprep.subr.mxu0 0.0
  %205 = vmatpush1.msra.mxu0 0.0
  %206 = vmatprep.subr.mxu0 0.0
  %207 = vmatpush1.msra.mxu0 0.0
  %208 = vmatprep.subr.mxu0 0.0
  %209 = vmatpush1.msra.mxu0 0.0
  %210 = vmatprep.subr.mxu0 0.0
  %211 = vmatpush1.msra.mxu0 0.0
  %212 = vmatprep.subr.mxu0 0.0
  %213 = vmatpush1.msra.mxu0 0.0
  %214 = vmatprep.subr.mxu0 0.0
  %215 = vmatpush1.msra.mxu0 0.0
  %216 = vmatprep.subr.mxu0 0.0
  %217 = vmatpush1.msra.mxu0 0.0
  %218 = vmatprep.subr.mxu0 0.0
  %219 = vmatpush1.msra.mxu0 0.0
  %220 = vmatprep.subr.mxu0 0.0
  %221 = vmatpush1.msra.mxu0 0.0
  %222 = vmatprep.subr.mxu0 0.0
  %223 = vmatpush1.msra.mxu0 0.0
  %224 = vmatprep.subr.mxu0 0.0
  %225 = vmatpush1.msra.mxu0 0.0
  %226 = vmatprep.subr.mxu0 0.0
  %227 = vmatpush1.msra.mxu0 0.0
  %228 = vmatprep.subr.mxu0 0.0
  %229 = vmatpush1.msra.mxu0 0.0
  %230 = vmatprep.subr.mxu0 0.0
  %231 = vmatpush1.msra.mxu0 0.0
  %232 = vmatprep.subr.mxu0 0.0
  %233 = vmatpush1.msra.mxu0 0.0
  %234 = vmatprep.mubr.f32.mxu0 0.0
  %235 = vmatmul.mubr.f32.gmra.mrb[0].mxu0 %v73
  %v236 = vpop.f32.mrb[0].mxu0
  %v237 = vadd.f32 0.0, %v236
  %v238 = vpop.f32.mrb[0].mxu0
  %239 = vmatprep.mubr.f32.mxu0 0.0
  %240 = vmatmul.mubr.f32.gmra.mrb[0].mxu0 %v75
  %v241 = vpop.f32.mrb[0].mxu0
  %v242 = vadd.f32 0.0, %v241
  %v243 = vpop.f32.mrb[0].mxu0
  %244 = vmatprep.mubr.f32.mxu0 0.0
  %245 = vmatmul.mubr.f32.gmra.mrb[0].mxu0 %v77
  %v246 = vpop.f32.mrb[0].mxu0
  %v247 = vadd.f32 0.0, %v246
  %v248 = vpop.f32.mrb[0].mxu0
  %249 = vmatprep.mubr.f32.mxu0 0.0
  %250 = vmatmul.mubr.f32.gmra.mrb[0].mxu0 %v79
  %v251 = vpop.f32.mrb[0].mxu0
  %v252 = vadd.f32 0.0, %v251
  %v253 = vpop.f32.mrb[0].mxu0
  %254 = vdwg.mxu0
  %v255 = vsel %vm72, %v14, 0
  %v257 = vsel %vm72, %v15, 0
  %v259 = vsel %vm72, %v16, 0
  %v261 = vsel %vm72, %v17, 0
  %263 = vmatprep.subr.mxu0 %v19
  %264 = vmatpush1.msra.mxu0 %v18
  %265 = vmatprep.subr.mxu0 %v22
  %266 = vmatpush1.msra.mxu0 %v21
  %267 = vmatprep.subr.mxu0 %v25
  %268 = vmatpush1.msra.mxu0 %v24
  %269 = vmatprep.subr.mxu0 %v28
  %270 = vmatpush1.msra.mxu0 %v27
  %271 = vmatprep.subr.mxu0 %v31
  %272 = vmatpush1.msra.mxu0 %v30
  %273 = vmatprep.subr.mxu0 %v34
  %274 = vmatpush1.msra.mxu0 %v33
  %275 = vmatprep.subr.mxu0 %v37
  %276 = vmatpush1.msra.mxu0 %v36
  %277 = vmatprep.subr.mxu0 0.0
  %278 = vmatpush1.msra.mxu0 0.0
  %279 = vmatprep.subr.mxu0 0.0
  %280 = vmatpush1.msra.mxu0 0.0
  %281 = vmatprep.subr.mxu0 0.0
  %282 = vmatpush1.msra.mxu0 0.0
  %283 = vmatprep.subr.mxu0 0.0
  %284 = vmatpush1.msra.mxu0 0.0
  %285 = vmatprep.subr.mxu0 0.0
  %286 = vmatpush1.msra.mxu0 0.0
  %287 = vmatprep.subr.mxu0 0.0
  %288 = vmatpush1.msra.mxu0 0.0
  %289 = vmatprep.subr.mxu0 0.0
  %290 = vmatpush1.msra.mxu0 0.0
  %291 = vmatprep.subr.mxu0 0.0
  %292 = vmatpush1.msra.mxu0 0.0
  %293 = vmatprep.subr.mxu0 0.0
  %294 = vmatpush1.msra.mxu0 0.0
  %295 = vmatprep.subr.mxu0 0.0
  %296 = vmatpush1.msra.mxu0 0.0
  %297 = vmatprep.subr.mxu0 0.0
  %298 = vmatpush1.msra.mxu0 0.0
  %299 = vmatprep.subr.mxu0 0.0
  %300 = vmatpush1.msra.mxu0 0.0
  %301 = vmatprep.subr.mxu0 0.0
  %302 = vmatpush1.msra.mxu0 0.0
  %303 = vmatprep.subr.mxu0 0.0
  %304 = vmatpush1.msra.mxu0 0.0
  %305 = vmatprep.subr.mxu0 0.0
  %306 = vmatpush1.msra.mxu0 0.0
  %307 = vmatprep.subr.mxu0 0.0
  %308 = vmatpush1.msra.mxu0 0.0
  %309 = vmatprep.subr.mxu0 0.0
  %310 = vmatpush1.msra.mxu0 0.0
  %311 = vmatprep.subr.mxu0 0.0
  %312 = vmatpush1.msra.mxu0 0.0
  %313 = vmatprep.subr.mxu0 0.0
  %314 = vmatpush1.msra.mxu0 0.0
  %315 = vmatprep.subr.mxu0 0.0
  %316 = vmatpush1.msra.mxu0 0.0
  %317 = vmatprep.subr.mxu0 0.0
  %318 = vmatpush1.msra.mxu0 0.0
  %319 = vmatprep.subr.mxu0 0.0
  %320 = vmatpush1.msra.mxu0 0.0
  %321 = vmatprep.subr.mxu0 0.0
  %322 = vmatpush1.msra.mxu0 0.0
  %323 = vmatprep.subr.mxu0 0.0
  %324 = vmatpush1.msra.mxu0 0.0
  %325 = vmatprep.subr.mxu0 0.0
  %326 = vmatpush1.msra.mxu0 0.0
  %327 = vmatprep.mubr.f32.mxu0 0.0
  %328 = vmatmul.mubr.f32.gmra.mrb[0].mxu0 %v255
  %v329 = vpop.f32.mrb[0].mxu0
  %v330 = vadd.f32 %v148, %v329
  %v331 = vpop.f32.mrb[0].mxu0
  %v332 = vadd.f32 %v150, %v331
  %333 = vmatprep.mubr.f32.mxu0 0.0
  %334 = vmatmul.mubr.f32.gmra.mrb[0].mxu0 %v257
  %v335 = vpop.f32.mrb[0].mxu0
  %v336 = vadd.f32 %v154, %v335
  %v337 = vpop.f32.mrb[0].mxu0
  %v338 = vadd.f32 %v156, %v337
  %339 = vmatprep.mubr.f32.mxu0 0.0
  %340 = vmatmul.mubr.f32.gmra.mrb[0].mxu0 %v259
  %v341 = vpop.f32.mrb[0].mxu0
  %v342 = vadd.f32 %v160, %v341
  %v343 = vpop.f32.mrb[0].mxu0
  %v344 = vadd.f32 %v162, %v343
  %345 = vmatprep.mubr.f32.mxu0 0.0
  %346 = vmatmul.mubr.f32.gmra.mrb[0].mxu0 %v261
  %v347 = vpop.f32.mrb[0].mxu0
  %v348 = vadd.f32 %v166, %v347
  %v349 = vpop.f32.mrb[0].mxu0
  %v350 = vadd.f32 %v168, %v349
  %351 = vdwg.mxu0
  %352 = vmatprep.subr.mxu0 0.0
  %353 = vmatpush1.msra.mxu0 %v20
  %354 = vmatprep.subr.mxu0 0.0
  %355 = vmatpush1.msra.mxu0 %v23
  %356 = vmatprep.subr.mxu0 0.0
  %357 = vmatpush1.msra.mxu0 %v26
  %358 = vmatprep.subr.mxu0 0.0
  %359 = vmatpush1.msra.mxu0 %v29
  %360 = vmatprep.subr.mxu0 0.0
  %361 = vmatpush1.msra.mxu0 %v32
  %362 = vmatprep.subr.mxu0 0.0
  %363 = vmatpush1.msra.mxu0 %v35
  %364 = vmatprep.subr.mxu0 0.0
  %365 = vmatpush1.msra.mxu0 %v38
  %366 = vmatprep.subr.mxu0 0.0
  %367 = vmatpush1.msra.mxu0 0.0
  %368 = vmatprep.subr.mxu0 0.0
  %369 = vmatpush1.msra.mxu0 0.0
  %370 = vmatprep.subr.mxu0 0.0
  %371 = vmatpush1.msra.mxu0 0.0
  %372 = vmatprep.subr.mxu0 0.0
  %373 = vmatpush1.msra.mxu0 0.0
  %374 = vmatprep.subr.mxu0 0.0
  %375 = vmatpush1.msra.mxu0 0.0
  %376 = vmatprep.subr.mxu0 0.0
  %377 = vmatpush1.msra.mxu0 0.0
  %378 = vmatprep.subr.mxu0 0.0
  %379 = vmatpush1.msra.mxu0 0.0
  %380 = vmatprep.subr.mxu0 0.0
  %381 = vmatpush1.msra.mxu0 0.0
  %382 = vmatprep.subr.mxu0 0.0
  %383 = vmatpush1.msra.mxu0 0.0
  %384 = vmatprep.subr.mxu0 0.0
  %385 = vmatpush1.msra.mxu0 0.0
  %386 = vmatprep.subr.mxu0 0.0
  %387 = vmatpush1.msra.mxu0 0.0
  %388 = vmatprep.subr.mxu0 0.0
  %389 = vmatpush1.msra.mxu0 0.0
  %390 = vmatprep.subr.mxu0 0.0
  %391 = vmatpush1.msra.mxu0 0.0
  %392 = vmatprep.subr.mxu0 0.0
  %393 = vmatpush1.msra.mxu0 0.0
  %394 = vmatprep.subr.mxu0 0.0
  %395 = vmatpush1.msra.mxu0 0.0
  %396 = vmatprep.subr.mxu0 0.0
  %397 = vmatpush1.msra.mxu0 0.0
  %398 = vmatprep.subr.mxu0 0.0
  %399 = vmatpush1.msra.mxu0 0.0
  %400 = vmatprep.subr.mxu0 0.0
  %401 = vmatpush1.msra.mxu0 0.0
  %402 = vmatprep.subr.mxu0 0.0
  %403 = vmatpush1.msra.mxu0 0.0
  %404 = vmatprep.subr.mxu0 0.0
  %405 = vmatpush1.msra.mxu0 0.0
  %406 = vmatprep.subr.mxu0 0.0
  %407 = vmatpush1.msra.mxu0 0.0
  %408 = vmatprep.subr.mxu0 0.0
  %409 = vmatpush1.msra.mxu0 0.0
  %410 = vmatprep.subr.mxu0 0.0
  %411 = vmatpush1.msra.mxu0 0.0
  %412 = vmatprep.subr.mxu0 0.0
  %413 = vmatpush1.msra.mxu0 0.0
  %414 = vmatprep.subr.mxu0 0.0
  %415 = vmatpush1.msra.mxu0 0.0
  %416 = vmatprep.mubr.f32.mxu0 0.0
  %417 = vmatmul.mubr.f32.gmra.mrb[0].mxu0 %v255
  %v418 = vpop.f32.mrb[0].mxu0
  %v419 = vadd.f32 %v237, %v418
  %v420 = vpop.f32.mrb[0].mxu0
  %421 = vmatprep.mubr.f32.mxu0 0.0
  %422 = vmatmul.mubr.f32.gmra.mrb[0].mxu0 %v257
  %v423 = vpop.f32.mrb[0].mxu0
  %v424 = vadd.f32 %v242, %v423
  %v425 = vpop.f32.mrb[0].mxu0
  %426 = vmatprep.mubr.f32.mxu0 0.0
  %427 = vmatmul.mubr.f32.gmra.mrb[0].mxu0 %v259
  %v428 = vpop.f32.mrb[0].mxu0
  %v429 = vadd.f32 %v247, %v428
  %v430 = vpop.f32.mrb[0].mxu0
  %431 = vmatprep.mubr.f32.mxu0 0.0
  %432 = vmatmul.mubr.f32.gmra.mrb[0].mxu0 %v261
  %v433 = vpop.f32.mrb[0].mxu0
  %v434 = vadd.f32 %v252, %v433
  %v435 = vpop.f32.mrb[0].mxu0
  %436 = vdwg.mxu0
  %v437 = vld [vmem:[%s1 + $0x150] sm:$0xff]
  %v438 = vld [vmem:[%s1 + $0x158] sm:$0xff]
  %v439 = vld [vmem:[%s1 + $0x160] sm:$0xff]
  %v440 = vld [vmem:[%s1 + $0x168] sm:$0xff]
  %v441 = vld [vmem:[%s1 + $0x170] sm:$0xff]
  %v442 = vld [vmem:[%s1 + $0x178] sm:$0xff]
  %v443 = vld [vmem:[%s1 + $0x180] sm:$0xff]
  %v444 = vld [vmem:[%s1 + $0x188] sm:$0xff]
  %v445 = vld [vmem:[%s1 + $0x190] sm:$0xff]
  %v446 = vld [vmem:[%s1 + $0x198] sm:$0xff]
  %v447 = vld [vmem:[%s1 + $0x1a0] sm:$0xff]
  %v448 = vld [vmem:[%s1 + $0x1a8] sm:$0xff]
  %v449 = vld [vmem:[%s1 + $0x1b0] sm:$0xff]
  %v450 = vld [vmem:[%s1 + $0x1b8] sm:$0xff]
  %v451 = vld [vmem:[%s1 + $0x1c0] sm:$0xff]
  %v452 = vld [vmem:[%s1 + $0x1c8] sm:$0xff]
  %v453 = vld [vmem:[%s1 + $0x1d0] sm:$0xff]
  %v454 = vld [vmem:[%s1 + $0x1d8] sm:$0xff]
  %v455 = vld [vmem:[%s1 + $0x1e0] sm:$0xff]
  %v456 = vld [vmem:[%s1 + $0x1e8] sm:$0xff]
  %v457 = vld [vmem:[%s1 + $0x1f0] sm:$0xff]
  %vm458 = vcmask 1045504
  %v459 = vrot.slane %v14, 2
  %v460 = vrot.slane %v15, 2
  %v461 = vsel %vm458, %v459, %v460
  %v462 = vrot.slane %v16, 2
  %v463 = vsel %vm458, %v460, %v462
  %v464 = vrot.slane %v17, 2
  %v465 = vsel %vm458, %v462, %v464
  %v466 = vsel %vm72, %v461, 0
  %v468 = vsel %vm72, %v463, 0
  %v470 = vsel %vm72, %v465, 0
  %v472 = vsel %vm72, %v464, 0
  %474 = vmatprep.subr.mxu0 %v438
  %475 = vmatpush1.msra.mxu0 %v437
  %476 = vmatprep.subr.mxu0 %v441
  %477 = vmatpush1.msra.mxu0 %v440
  %478 = vmatprep.subr.mxu0 %v444
  %479 = vmatpush1.msra.mxu0 %v443
  %480 = vmatprep.subr.mxu0 %v447
  %481 = vmatpush1.msra.mxu0 %v446
  %482 = vmatprep.subr.mxu0 %v450
  %483 = vmatpush1.msra.mxu0 %v449
  %484 = vmatprep.subr.mxu0 %v453
  %485 = vmatpush1.msra.mxu0 %v452
  %486 = vmatprep.subr.mxu0 %v456
  %487 = vmatpush1.msra.mxu0 %v455
  %488 = vmatprep.subr.mxu0 0.0
  %489 = vmatpush1.msra.mxu0 0.0
  %490 = vmatprep.subr.mxu0 0.0
  %491 = vmatpush1.msra.mxu0 0.0
  %492 = vmatprep.subr.mxu0 0.0
  %493 = vmatpush1.msra.mxu0 0.0
  %494 = vmatprep.subr.mxu0 0.0
  %495 = vmatpush1.msra.mxu0 0.0
  %496 = vmatprep.subr.mxu0 0.0
  %497 = vmatpush1.msra.mxu0 0.0
  %498 = vmatprep.subr.mxu0 0.0
  %499 = vmatpush1.msra.mxu0 0.0
  %500 = vmatprep.subr.mxu0 0.0
  %501 = vmatpush1.msra.mxu0 0.0
  %502 = vmatprep.subr.mxu0 0.0
  %503 = vmatpush1.msra.mxu0 0.0
  %504 = vmatprep.subr.mxu0 0.0
  %505 = vmatpush1.msra.mxu0 0.0
  %506 = vmatprep.subr.mxu0 0.0
  %507 = vmatpush1.msra.mxu0 0.0
  %508 = vmatprep.subr.mxu0 0.0
  %509 = vmatpush1.msra.mxu0 0.0
  %510 = vmatprep.subr.mxu0 0.0
  %511 = vmatpush1.msra.mxu0 0.0
  %512 = vmatprep.subr.mxu0 0.0
  %513 = vmatpush1.msra.mxu0 0.0
  %514 = vmatprep.subr.mxu0 0.0
  %515 = vmatpush1.msra.mxu0 0.0
  %516 = vmatprep.subr.mxu0 0.0
  %517 = vmatpush1.msra.mxu0 0.0
  %518 = vmatprep.subr.mxu0 0.0
  %519 = vmatpush1.msra.mxu0 0.0
  %520 = vmatprep.subr.mxu0 0.0
  %521 = vmatpush1.msra.mxu0 0.0
  %522 = vmatprep.subr.mxu0 0.0
  %523 = vmatpush1.msra.mxu0 0.0
  %524 = vmatprep.subr.mxu0 0.0
  %525 = vmatpush1.msra.mxu0 0.0
  %526 = vmatprep.subr.mxu0 0.0
  %527 = vmatpush1.msra.mxu0 0.0
  %528 = vmatprep.subr.mxu0 0.0
  %529 = vmatpush1.msra.mxu0 0.0
  %530 = vmatprep.subr.mxu0 0.0
  %531 = vmatpush1.msra.mxu0 0.0
  %532 = vmatprep.subr.mxu0 0.0
  %533 = vmatpush1.msra.mxu0 0.0
  %534 = vmatprep.subr.mxu0 0.0
  %535 = vmatpush1.msra.mxu0 0.0
  %536 = vmatprep.subr.mxu0 0.0
  %537 = vmatpush1.msra.mxu0 0.0
  %538 = vmatprep.mubr.f32.mxu0 0.0
  %539 = vmatmul.mubr.f32.gmra.mrb[0].mxu0 %v466
  %v540 = vpop.f32.mrb[0].mxu0
  %v541 = vadd.f32 0.0, %v540
  %v542 = vpop.f32.mrb[0].mxu0
  %v543 = vadd.f32 0.0, %v542
  %544 = vmatprep.mubr.f32.mxu0 0.0
  %545 = vmatmul.mubr.f32.gmra.mrb[0].mxu0 %v468
  %v546 = vpop.f32.mrb[0].mxu0
  %v547 = vadd.f32 0.0, %v546
  %v548 = vpop.f32.mrb[0].mxu0
  %v549 = vadd.f32 0.0, %v548
  %550 = vmatprep.mubr.f32.mxu0 0.0
  %551 = vmatmul.mubr.f32.gmra.mrb[0].mxu0 %v470
  %v552 = vpop.f32.mrb[0].mxu0
  %v553 = vadd.f32 0.0, %v552
  %v554 = vpop.f32.mrb[0].mxu0
  %v555 = vadd.f32 0.0, %v554
  %556 = vmatprep.mubr.f32.mxu0 0.0
  %557 = vmatmul.mubr.f32.gmra.mrb[0].mxu0 %v472
  %v558 = vpop.f32.mrb[0].mxu0
  %v559 = vadd.f32 0.0, %v558
  %v560 = vpop.f32.mrb[0].mxu0
  %v561 = vadd.f32 0.0, %v560
  %562 = vdwg.mxu0
  %563 = vmatprep.subr.mxu0 0.0
  %564 = vmatpush1.msra.mxu0 %v439
  %565 = vmatprep.subr.mxu0 0.0
  %566 = vmatpush1.msra.mxu0 %v442
  %567 = vmatprep.subr.mxu0 0.0
  %568 = vmatpush1.msra.mxu0 %v445
  %569 = vmatprep.subr.mxu0 0.0
  %570 = vmatpush1.msra.mxu0 %v448
  %571 = vmatprep.subr.mxu0 0.0
  %572 = vmatpush1.msra.mxu0 %v451
  %573 = vmatprep.subr.mxu0 0.0
  %574 = vmatpush1.msra.mxu0 %v454
  %575 = vmatprep.subr.mxu0 0.0
  %576 = vmatpush1.msra.mxu0 %v457
  %577 = vmatprep.subr.mxu0 0.0
  %578 = vmatpush1.msra.mxu0 0.0
  %579 = vmatprep.subr.mxu0 0.0
  %580 = vmatpush1.msra.mxu0 0.0
  %581 = vmatprep.subr.mxu0 0.0
  %582 = vmatpush1.msra.mxu0 0.0
  %583 = vmatprep.subr.mxu0 0.0
  %584 = vmatpush1.msra.mxu0 0.0
  %585 = vmatprep.subr.mxu0 0.0
  %586 = vmatpush1.msra.mxu0 0.0
  %587 = vmatprep.subr.mxu0 0.0
  %588 = vmatpush1.msra.mxu0 0.0
  %589 = vmatprep.subr.mxu0 0.0
  %590 = vmatpush1.msra.mxu0 0.0
  %591 = vmatprep.subr.mxu0 0.0
  %592 = vmatpush1.msra.mxu0 0.0
  %593 = vmatprep.subr.mxu0 0.0
  %594 = vmatpush1.msra.mxu0 0.0
  %595 = vmatprep.subr.mxu0 0.0
  %596 = vmatpush1.msra.mxu0 0.0
  %597 = vmatprep.subr.mxu0 0.0
  %598 = vmatpush1.msra.mxu0 0.0
  %599 = vmatprep.subr.mxu0 0.0
  %600 = vmatpush1.msra.mxu0 0.0
  %601 = vmatprep.subr.mxu0 0.0
  %602 = vmatpush1.msra.mxu0 0.0
  %603 = vmatprep.subr.mxu0 0.0
  %604 = vmatpush1.msra.mxu0 0.0
  %605 = vmatprep.subr.mxu0 0.0
  %606 = vmatpush1.msra.mxu0 0.0
  %607 = vmatprep.subr.mxu0 0.0
  %608 = vmatpush1.msra.mxu0 0.0
  %609 = vmatprep.subr.mxu0 0.0
  %610 = vmatpush1.msra.mxu0 0.0
  %611 = vmatprep.subr.mxu0 0.0
  %612 = vmatpush1.msra.mxu0 0.0
  %613 = vmatprep.subr.mxu0 0.0
  %614 = vmatpush1.msra.mxu0 0.0
  %615 = vmatprep.subr.mxu0 0.0
  %616 = vmatpush1.msra.mxu0 0.0
  %617 = vmatprep.subr.mxu0 0.0
  %618 = vmatpush1.msra.mxu0 0.0
  %619 = vmatprep.subr.mxu0 0.0
  %620 = vmatpush1.msra.mxu0 0.0
  %621 = vmatprep.subr.mxu0 0.0
  %622 = vmatpush1.msra.mxu0 0.0
  %623 = vmatprep.subr.mxu0 0.0
  %624 = vmatpush1.msra.mxu0 0.0
  %625 = vmatprep.subr.mxu0 0.0
  %626 = vmatpush1.msra.mxu0 0.0
  %627 = vmatprep.mubr.f32.mxu0 0.0
  %628 = vmatmul.mubr.f32.gmra.mrb[0].mxu0 %v466
  %v629 = vpop.f32.mrb[0].mxu0
  %v630 = vadd.f32 0.0, %v629
  %v631 = vpop.f32.mrb[0].mxu0
  %632 = vmatprep.mubr.f32.mxu0 0.0
  %633 = vmatmul.mubr.f32.gmra.mrb[0].mxu0 %v468
  %v634 = vpop.f32.mrb[0].mxu0
  %v635 = vadd.f32 0.0, %v634
  %v636 = vpop.f32.mrb[0].mxu0
  %637 = vmatprep.mubr.f32.mxu0 0.0
  %638 = vmatmul.mubr.f32.gmra.mrb[0].mxu0 %v470
  %v639 = vpop.f32.mrb[0].mxu0
  %v640 = vadd.f32 0.0, %v639
  %v641 = vpop.f32.mrb[0].mxu0
  %642 = vmatprep.mubr.f32.mxu0 0.0
  %643 = vmatmul.mubr.f32.gmra.mrb[0].mxu0 %v472
  %v644 = vpop.f32.mrb[0].mxu0
  %v645 = vadd.f32 0.0, %v644
  %v646 = vpop.f32.mrb[0].mxu0
  %647 = vdwg.mxu0
  %v648 = vadd.f32 %v330, %v541
  %v649 = vadd.f32 %v332, %v543
  %v650 = vadd.f32 %v419, %v630
  %v651 = vadd.f32 %v336, %v547
  %v652 = vadd.f32 %v338, %v549
  %v653 = vadd.f32 %v424, %v635
  %v654 = vadd.f32 %v342, %v553
  %v655 = vadd.f32 %v344, %v555
  %v656 = vadd.f32 %v429, %v640
  %v657 = vadd.f32 %v348, %v559
  %v658 = vadd.f32 %v350, %v561
  %v659 = vadd.f32 %v434, %v645
  %s660 = scalar_lea.vmem %s1, 504
  %v661 = vld [vmem:[%s660] ss:$8 sm:$0x7]
  %v663 = vlaneseq
  %v664 = vshrl.u32 %v663, 7
  %v665 = vsub.s32 0, %v664
  %v666 = vrot.slane %v661, %v665
  %v667 = vlaneseq
  %v668 = vshrl.u32 %v667, 7
  %v669 = vsub.s32 1, %v668
  %v670 = vrot.slane %v661, %v669
  %v671 = vlaneseq
  %v672 = vshrl.u32 %v671, 7
  %v673 = vsub.s32 2, %v672
  %v674 = vrot.slane %v661, %v673
  %v678 = vadd.f32 %v648, %v666
  %v679 = vadd.f32 %v649, %v670
  %v680 = vadd.f32 %v650, %v674
  %v681 = vadd.f32 %v651, %v666
  %v682 = vadd.f32 %v652, %v670
  %v683 = vadd.f32 %v653, %v674
  %v684 = vadd.f32 %v654, %v666
  %v685 = vadd.f32 %v655, %v670
  %v686 = vadd.f32 %v656, %v674
  %v687 = vadd.f32 %v657, %v666
  %v688 = vadd.f32 %v658, %v670
  %v689 = vadd.f32 %v659, %v674
  %v702 = vrot.slane %v678, 1
  %v703 = vrot.slane %v681, 1
  %v704 = vsel %vm64, %v702, %v703
  %v705 = vrot.slane %v679, 1
  %v706 = vrot.slane %v682, 1
  %v707 = vsel %vm64, %v705, %v706
  %v708 = vrot.slane %v680, 1
  %v709 = vrot.slane %v683, 1
  %v710 = vsel %vm64, %v708, %v709
  %v711 = vrot.slane %v684, 1
  %v712 = vsel %vm64, %v703, %v711
  %v713 = vrot.slane %v685, 1
  %v714 = vsel %vm64, %v706, %v713
  %v715 = vrot.slane %v686, 1
  %v716 = vsel %vm64, %v709, %v715
  %v717 = vrot.slane %v687, 1
  %v718 = vsel %vm64, %v711, %v717
  %v719 = vrot.slane %v688, 1
  %v720 = vsel %vm64, %v713, %v719
  %v721 = vrot.slane %v689, 1
  %v722 = vsel %vm64, %v715, %v721
  %v735 = vmax.f32 %v678, %v704
  %v736 = vmax.f32 %v679, %v707
  %v737 = vmax.f32 %v680, %v710
  %v738 = vmax.f32 %v681, %v712
  %v739 = vmax.f32 %v682, %v714
  %v740 = vmax.f32 %v683, %v716
  %v741 = vmax.f32 %v684, %v718
  %v742 = vmax.f32 %v685, %v720
  %v743 = vmax.f32 %v686, %v722
  %v744 = vmax.f32 %v687, %v717
  %v745 = vmax.f32 %v688, %v719
  %v746 = vmax.f32 %v689, %v721
  %759 = vrot.lane.b32.xlu0 %v735, 127
  %v760 = vpop.permute.xlu0 %759
  %761 = vrot.lane.b32.xlu0 %v736, 127
  %v762 = vpop.permute.xlu0 %761
  %763 = vrot.lane.b32.xlu0 %v737, 127
  %v764 = vpop.permute.xlu0 %763
  %765 = vrot.lane.b32.xlu0 %v738, 127
  %v766 = vpop.permute.xlu0 %765
  %767 = vrot.lane.b32.xlu0 %v739, 127
  %v768 = vpop.permute.xlu0 %767
  %769 = vrot.lane.b32.xlu0 %v740, 127
  %v770 = vpop.permute.xlu0 %769
  %771 = vrot.lane.b32.xlu0 %v741, 127
  %v772 = vpop.permute.xlu0 %771
  %773 = vrot.lane.b32.xlu0 %v742, 127
  %v774 = vpop.permute.xlu0 %773
  %775 = vrot.lane.b32.xlu0 %v743, 127
  %v776 = vpop.permute.xlu0 %775
  %777 = vrot.lane.b32.xlu0 %v744, 127
  %v778 = vpop.permute.xlu0 %777
  %779 = vrot.lane.b32.xlu0 %v745, 127
  %v780 = vpop.permute.xlu0 %779
  %781 = vrot.lane.b32.xlu0 %v746, 127
  %v782 = vpop.permute.xlu0 %781
  %vm783 = vcmask 1039360
  %v784 = vsel %vm783, %v760, %v762
  %v785 = vsel %vm783, %v762, %v764
  %v786 = vsel %vm783, %v766, %v768
  %v787 = vsel %vm783, %v768, %v770
  %v788 = vsel %vm783, %v772, %v774
  %v789 = vsel %vm783, %v774, %v776
  %v790 = vsel %vm783, %v778, %v780
  %v791 = vsel %vm783, %v780, %v782
  %v804 = vmax.f32 %v735, %v784
  %v805 = vmax.f32 %v736, %v785
  %v806 = vmax.f32 %v737, %v764
  %v807 = vmax.f32 %v738, %v786
  %v808 = vmax.f32 %v739, %v787
  %v809 = vmax.f32 %v740, %v770
  %v810 = vmax.f32 %v741, %v788
  %v811 = vmax.f32 %v742, %v789
  %v812 = vmax.f32 %v743, %v776
  %v813 = vmax.f32 %v744, %v790
  %v814 = vmax.f32 %v745, %v791
  %v815 = vmax.f32 %v746, %v782
  %v816 = vld [vmem:[%s1 + $0x210] sm:$0xff]
  %v817 = vld [vmem:[%s1 + $0x228] sm:$0x1f]
  %vm818 = vcmask 203776
  %v820 = vsel %vm818, %v816, 0
  %v823 = vsel %vm818, %v817, 0
  %vm825 = vcmask 1040384
  %v827 = vsel %vm825, %v813, 0
  %v830 = vsel %vm825, %v814, 0
  %v833 = vsel %vm825, %v815, 0
  %835 = vmatprep.subr.mxu0 %v805
  %836 = vmatpush1.msra.mxu0 %v804
  %837 = vmatprep.subr.mxu0 %v808
  %838 = vmatpush1.msra.mxu0 %v807
  %839 = vmatprep.subr.mxu0 %v811
  %840 = vmatpush1.msra.mxu0 %v810
  %841 = vmatprep.subr.mxu0 %v830
  %842 = vmatpush1.msra.mxu0 %v827
  %843 = vmatprep.subr.mxu0 0.0
  %844 = vmatpush1.msra.mxu0 0.0
  %845 = vmatprep.subr.mxu0 0.0
  %846 = vmatpush1.msra.mxu0 0.0
  %847 = vmatprep.subr.mxu0 0.0
  %848 = vmatpush1.msra.mxu0 0.0
  %849 = vmatprep.subr.mxu0 0.0
  %850 = vmatpush1.msra.mxu0 0.0
  %851 = vmatprep.subr.mxu0 0.0
  %852 = vmatpush1.msra.mxu0 0.0
  %853 = vmatprep.subr.mxu0 0.0
  %854 = vmatpush1.msra.mxu0 0.0
  %855 = vmatprep.subr.mxu0 0.0
  %856 = vmatpush1.msra.mxu0 0.0
  %857 = vmatprep.subr.mxu0 0.0
  %858 = vmatpush1.msra.mxu0 0.0
  %859 = vmatprep.subr.mxu0 0.0
  %860 = vmatpush1.msra.mxu0 0.0
  %861 = vmatprep.subr.mxu0 0.0
  %862 = vmatpush1.msra.mxu0 0.0
  %863 = vmatprep.subr.mxu0 0.0
  %864 = vmatpush1.msra.mxu0 0.0
  %865 = vmatprep.subr.mxu0 0.0
  %866 = vmatpush1.msra.mxu0 0.0
  %867 = vmatprep.subr.mxu0 0.0
  %868 = vmatpush1.msra.mxu0 0.0
  %869 = vmatprep.subr.mxu0 0.0
  %870 = vmatpush1.msra.mxu0 0.0
  %871 = vmatprep.subr.mxu0 0.0
  %872 = vmatpush1.msra.mxu0 0.0
  %873 = vmatprep.subr.mxu0 0.0
  %874 = vmatpush1.msra.mxu0 0.0
  %875 = vmatprep.subr.mxu0 0.0
  %876 = vmatpush1.msra.mxu0 0.0
  %877 = vmatprep.subr.mxu0 0.0
  %878 = vmatpush1.msra.mxu0 0.0
  %879 = vmatprep.subr.mxu0 0.0
  %880 = vmatpush1.msra.mxu0 0.0
  %881 = vmatprep.subr.mxu0 0.0
  %882 = vmatpush1.msra.mxu0 0.0
  %883 = vmatprep.subr.mxu0 0.0
  %884 = vmatpush1.msra.mxu0 0.0
  %885 = vmatprep.subr.mxu0 0.0
  %886 = vmatpush1.msra.mxu0 0.0
  %887 = vmatprep.subr.mxu0 0.0
  %888 = vmatpush1.msra.mxu0 0.0
  %889 = vmatprep.subr.mxu0 0.0
  %890 = vmatpush1.msra.mxu0 0.0
  %891 = vmatprep.subr.mxu0 0.0
  %892 = vmatpush1.msra.mxu0 0.0
  %893 = vmatprep.subr.mxu0 0.0
  %894 = vmatpush1.msra.mxu0 0.0
  %895 = vmatprep.subr.mxu0 0.0
  %896 = vmatpush1.msra.mxu0 0.0
  %897 = vmatprep.subr.mxu0 0.0
  %898 = vmatpush1.msra.mxu0 0.0
  %899 = vmatprep.mubr.f32.mxu0 0.0
  %900 = vmatmul.mubr.f32.gmra.mrb[0].mxu0 %v820
  %v901 = vpop.f32.mrb[0].mxu0
  %v902 = vadd.f32 0.0, %v901
  %v903 = vpop.f32.mrb[0].mxu0
  %v904 = vadd.f32 0.0, %v903
  %905 = vmatprep.mubr.f32.mxu0 0.0
  %906 = vmatmul.mubr.f32.gmra.mrb[0].mxu0 %v823
  %v907 = vpop.f32.mrb[0].mxu0
  %v908 = vadd.f32 0.0, %v907
  %v909 = vpop.f32.mrb[0].mxu0
  %v910 = vadd.f32 0.0, %v909
  %911 = vdwg.mxu0
  %912 = vmatprep.subr.mxu0 0.0
  %913 = vmatpush1.msra.mxu0 %v806
  %914 = vmatprep.subr.mxu0 0.0
  %915 = vmatpush1.msra.mxu0 %v809
  %916 = vmatprep.subr.mxu0 0.0
  %917 = vmatpush1.msra.mxu0 %v812
  %918 = vmatprep.subr.mxu0 0.0
  %919 = vmatpush1.msra.mxu0 %v833
  %920 = vmatprep.subr.mxu0 0.0
  %921 = vmatpush1.msra.mxu0 0.0
  %922 = vmatprep.subr.mxu0 0.0
  %923 = vmatpush1.msra.mxu0 0.0
  %924 = vmatprep.subr.mxu0 0.0
  %925 = vmatpush1.msra.mxu0 0.0
  %926 = vmatprep.subr.mxu0 0.0
  %927 = vmatpush1.msra.mxu0 0.0
  %928 = vmatprep.subr.mxu0 0.0
  %929 = vmatpush1.msra.mxu0 0.0
  %930 = vmatprep.subr.mxu0 0.0
  %931 = vmatpush1.msra.mxu0 0.0
  %932 = vmatprep.subr.mxu0 0.0
  %933 = vmatpush1.msra.mxu0 0.0
  %934 = vmatprep.subr.mxu0 0.0
  %935 = vmatpush1.msra.mxu0 0.0
  %936 = vmatprep.subr.mxu0 0.0
  %937 = vmatpush1.msra.mxu0 0.0
  %938 = vmatprep.subr.mxu0 0.0
  %939 = vmatpush1.msra.mxu0 0.0
  %940 = vmatprep.subr.mxu0 0.0
  %941 = vmatpush1.msra.mxu0 0.0
  %942 = vmatprep.subr.mxu0 0.0
  %943 = vmatpush1.msra.mxu0 0.0
  %944 = vmatprep.subr.mxu0 0.0
  %945 = vmatpush1.msra.mxu0 0.0
  %946 = vmatprep.subr.mxu0 0.0
  %947 = vmatpush1.msra.mxu0 0.0
  %948 = vmatprep.subr.mxu0 0.0
  %949 = vmatpush1.msra.mxu0 0.0
  %950 = vmatprep.subr.mxu0 0.0
  %951 = vmatpush1.msra.mxu0 0.0
  %952 = vmatprep.subr.mxu0 0.0
  %953 = vmatpush1.msra.mxu0 0.0
  %954 = vmatprep.subr.mxu0 0.0
  %955 = vmatpush1.msra.mxu0 0.0
  %956 = vmatprep.subr.mxu0 0.0
  %957 = vmatpush1.msra.mxu0 0.0
  %958 = vmatprep.subr.mxu0 0.0
  %959 = vmatpush1.msra.mxu0 0.0
  %960 = vmatprep.subr.mxu0 0.0
  %961 = vmatpush1.msra.mxu0 0.0
  %962 = vmatprep.subr.mxu0 0.0
  %963 = vmatpush1.msra.mxu0 0.0
  %964 = vmatprep.subr.mxu0 0.0
  %965 = vmatpush1.msra.mxu0 0.0
  %966 = vmatprep.subr.mxu0 0.0
  %967 = vmatpush1.msra.mxu0 0.0
  %968 = vmatprep.subr.mxu0 0.0
  %969 = vmatpush1.msra.mxu0 0.0
  %970 = vmatprep.subr.mxu0 0.0
  %971 = vmatpush1.msra.mxu0 0.0
  %972 = vmatprep.subr.mxu0 0.0
  %973 = vmatpush1.msra.mxu0 0.0
  %974 = vmatprep.subr.mxu0 0.0
  %975 = vmatpush1.msra.mxu0 0.0
  %976 = vmatprep.mubr.f32.mxu0 0.0
  %977 = vmatmul.mubr.f32.gmra.mrb[0].mxu0 %v820
  %v978 = vpop.f32.mrb[0].mxu0
  %v979 = vadd.f32 0.0, %v978
  %v980 = vpop.f32.mrb[0].mxu0
  %981 = vmatprep.mubr.f32.mxu0 0.0
  %982 = vmatmul.mubr.f32.gmra.mrb[0].mxu0 %v823
  %v983 = vpop.f32.mrb[0].mxu0
  %v984 = vadd.f32 0.0, %v983
  %v985 = vpop.f32.mrb[0].mxu0
  %986 = vdwg.mxu0
  %v987 = vld [vmem:[%s1 + $0x240] sm:$0xff]
  %v988 = vld [vmem:[%s1 + $0x248] sm:$0xff]
  %v989 = vld [vmem:[%s1 + $0x258] sm:$0xff]
  %v990 = vld [vmem:[%s1 + $0x260] sm:$0xff]
  %v991 = vld [vmem:[%s1 + $0x270] sm:$0xff]
  %v992 = vld [vmem:[%s1 + $0x278] sm:$0xff]
  %v993 = vld [vmem:[%s1 + $0x288] sm:$0xff]
  %v994 = vld [vmem:[%s1 + $0x290] sm:$0xff]
  %v995 = vld [vmem:[%s1 + $0x2a0] sm:$0xff]
  %v996 = vld [vmem:[%s1 + $0x2a8] sm:$0xff]
  %v997 = vld [vmem:[%s1 + $0x2b8] sm:$0xff]
  %v998 = vld [vmem:[%s1 + $0x2c0] sm:$0xff]
  %v999 = vld [vmem:[%s1 + $0x2d0] sm:$0xff]
  %v1000 = vld [vmem:[%s1 + $0x2d8] sm:$0xff]
  %v1001 = vld [vmem:[%s1 + $0x2e8] sm:$0xff]
  %v1002 = vld [vmem:[%s1 + $0x2f0] sm:$0xff]
  %v1003 = vld [vmem:[%s1 + $0x300] sm:$0xff]
  %v1004 = vld [vmem:[%s1 + $0x308] sm:$0xff]
  %v1005 = vld [vmem:[%s1 + $0x318] sm:$0xff]
  %v1006 = vld [vmem:[%s1 + $0x320] sm:$0xff]
  %v1007 = vld [vmem:[%s1 + $0x330] sm:$0xff]
  %v1008 = vld [vmem:[%s1 + $0x338] sm:$0xff]
  %v1009 = vld [vmem:[%s1 + $0x348] sm:$0xff]
  %v1010 = vld [vmem:[%s1 + $0x350] sm:$0xff]
  %v1011 = vld [vmem:[%s1 + $0x360] sm:$0xff]
  %v1012 = vld [vmem:[%s1 + $0x368] sm:$0xff]
  %v1013 = vld [vmem:[%s1 + $0x378] sm:$0xff]
  %v1014 = vld [vmem:[%s1 + $0x380] sm:$0xff]
  %v1015 = vld [vmem:[%s1 + $0x390] sm:$0xff]
  %v1016 = vld [vmem:[%s1 + $0x398] sm:$0xff]
  %v1017 = vld [vmem:[%s1 + $0x3a8] sm:$0xff]
  %v1018 = vld [vmem:[%s1 + $0x3b0] sm:$0xff]
  %v1019 = vld [vmem:[%s1 + $0x3c0] sm:$0xff]
  %v1020 = vld [vmem:[%s1 + $0x3c8] sm:$0xff]
  %v1021 = vld [vmem:[%s1 + $0x3d8] sm:$0xff]
  %v1022 = vld [vmem:[%s1 + $0x3e0] sm:$0xff]
  %v1023 = vld [vmem:[%s1 + $0x3f0] sm:$0xff]
  %v1024 = vld [vmem:[%s1 + $0x3f8] sm:$0xff]
  %v1025 = vld [vmem:[%s1 + $0x408] sm:$0xff]
  %v1026 = vld [vmem:[%s1 + $0x410] sm:$0xff]
  %v1027 = vld [vmem:[%s1 + $0x420] sm:$0xff]
  %v1028 = vld [vmem:[%s1 + $0x428] sm:$0xff]
  %v1029 = vld [vmem:[%s1 + $0x438] sm:$0xff]
  %v1030 = vld [vmem:[%s1 + $0x440] sm:$0xff]
  %v1031 = vld [vmem:[%s1 + $0x450] sm:$0xff]
  %v1032 = vld [vmem:[%s1 + $0x458] sm:$0xff]
  %v1033 = vld [vmem:[%s1 + $0x468] sm:$0xff]
  %v1034 = vld [vmem:[%s1 + $0x470] sm:$0xff]
  %v1035 = vld [vmem:[%s1 + $0x480] sm:$0xff]
  %v1036 = vld [vmem:[%s1 + $0x488] sm:$0xff]
  %v1037 = vld [vmem:[%s1 + $0x498] sm:$0xff]
  %v1038 = vld [vmem:[%s1 + $0x4a0] sm:$0xff]
  %v1039 = vld [vmem:[%s1 + $0x4b0] sm:$0xff]
  %v1040 = vld [vmem:[%s1 + $0x4b8] sm:$0xff]
  %v1041 = vld [vmem:[%s1 + $0x4c8] sm:$0xff]
  %v1042 = vld [vmem:[%s1 + $0x4d0] sm:$0xff]
  %v1043 = vld [vmem:[%s1 + $0x4e0] sm:$0xff]
  %v1044 = vld [vmem:[%s1 + $0x4e8] sm:$0xff]
  %v1045 = vld [vmem:[%s1 + $0x4f8] sm:$0xff]
  %v1046 = vld [vmem:[%s1 + $0x500] sm:$0xff]
  %v1047 = vld [vmem:[%s1 + $0x510] sm:$0xff]
  %v1048 = vld [vmem:[%s1 + $0x518] sm:$0xff]
  %v1049 = vld [vmem:[%s1 + $0x528] sm:$0xff]
  %v1050 = vld [vmem:[%s1 + $0x530] sm:$0xff]
  %v1051 = vld [vmem:[%s1 + $0x540] sm:$0x7]
  %v1052 = vld [vmem:[%s1 + $0x548] sm:$0x7]
  %vm1053 = vcmask 23552
  %v1055 = vsel %vm1053, %v979, 0
  %v1058 = vsel %vm1053, %v984, 0
  %vm1060 = vcmask 1042432
  %v1062 = vsel %vm1060, %v1051, 0
  %v1065 = vsel %vm1060, %v1052, 0
  %1067 = vmatprep.subr.mxu0 %v988
  %1068 = vmatpush1.msra.mxu0 %v987
  %1069 = vmatprep.subr.mxu0 %v990
  %1070 = vmatpush1.msra.mxu0 %v989
  %1071 = vmatprep.subr.mxu0 %v992
  %1072 = vmatpush1.msra.mxu0 %v991
  %1073 = vmatprep.subr.mxu0 %v994
  %1074 = vmatpush1.msra.mxu0 %v993
  %1075 = vmatprep.subr.mxu0 %v996
  %1076 = vmatpush1.msra.mxu0 %v995
  %1077 = vmatprep.subr.mxu0 %v998
  %1078 = vmatpush1.msra.mxu0 %v997
  %1079 = vmatprep.subr.mxu0 %v1000
  %1080 = vmatpush1.msra.mxu0 %v999
  %1081 = vmatprep.subr.mxu0 %v1002
  %1082 = vmatpush1.msra.mxu0 %v1001
  %1083 = vmatprep.subr.mxu0 %v1004
  %1084 = vmatpush1.msra.mxu0 %v1003
  %1085 = vmatprep.subr.mxu0 %v1006
  %1086 = vmatpush1.msra.mxu0 %v1005
  %1087 = vmatprep.subr.mxu0 %v1008
  %1088 = vmatpush1.msra.mxu0 %v1007
  %1089 = vmatprep.subr.mxu0 %v1010
  %1090 = vmatpush1.msra.mxu0 %v1009
  %1091 = vmatprep.subr.mxu0 %v1012
  %1092 = vmatpush1.msra.mxu0 %v1011
  %1093 = vmatprep.subr.mxu0 %v1014
  %1094 = vmatpush1.msra.mxu0 %v1013
  %1095 = vmatprep.subr.mxu0 %v1016
  %1096 = vmatpush1.msra.mxu0 %v1015
  %1097 = vmatprep.subr.mxu0 %v1018
  %1098 = vmatpush1.msra.mxu0 %v1017
  %1099 = vmatprep.subr.mxu0 %v1020
  %1100 = vmatpush1.msra.mxu0 %v1019
  %1101 = vmatprep.subr.mxu0 %v1022
  %1102 = vmatpush1.msra.mxu0 %v1021
  %1103 = vmatprep.subr.mxu0 %v1024
  %1104 = vmatpush1.msra.mxu0 %v1023
  %1105 = vmatprep.subr.mxu0 %v1026
  %1106 = vmatpush1.msra.mxu0 %v1025
  %1107 = vmatprep.subr.mxu0 %v1028
  %1108 = vmatpush1.msra.mxu0 %v1027
  %1109 = vmatprep.subr.mxu0 %v1030
  %1110 = vmatpush1.msra.mxu0 %v1029
  %1111 = vmatprep.subr.mxu0 %v1032
  %1112 = vmatpush1.msra.mxu0 %v1031
  %1113 = vmatprep.subr.mxu0 %v1034
  %1114 = vmatpush1.msra.mxu0 %v1033
  %1115 = vmatprep.subr.mxu0 %v1036
  %1116 = vmatpush1.msra.mxu0 %v1035
  %1117 = vmatprep.subr.mxu0 %v1038
  %1118 = vmatpush1.msra.mxu0 %v1037
  %1119 = vmatprep.subr.mxu0 %v1040
  %1120 = vmatpush1.msra.mxu0 %v1039
  %1121 = vmatprep.subr.mxu0 %v1042
  %1122 = vmatpush1.msra.mxu0 %v1041
  %1123 = vmatprep.subr.mxu0 %v1044
  %1124 = vmatpush1.msra.mxu0 %v1043
  %1125 = vmatprep.subr.mxu0 %v1046
  %1126 = vmatpush1.msra.mxu0 %v1045
  %1127 = vmatprep.subr.mxu0 %v1048
  %1128 = vmatpush1.msra.mxu0 %v1047
  %1129 = vmatprep.subr.mxu0 %v1050
  %1130 = vmatpush1.msra.mxu0 %v1049
  %1131 = vmatprep.mubr.f32.mxu0 %v904
  %1132 = vmatmul.mubr.f32.gmra.mrb[0].mxu0 %v902
  %v1133 = vpop.f32.mrb[0].mxu0
  %v1134 = vadd.f32 0.0, %v1133
  %v1135 = vpop.f32.mrb[0].mxu0
  %v1136 = vadd.f32 0.0, %v1135
  %1137 = vmatprep.mubr.f32.mxu0 %v910
  %1138 = vmatmul.mubr.f32.gmra.mrb[0].mxu0 %v908
  %v1139 = vpop.f32.mrb[0].mxu0
  %v1140 = vadd.f32 0.0, %v1139
  %v1141 = vpop.f32.mrb[0].mxu0
  %v1142 = vadd.f32 0.0, %v1141
  %1143 = vdwg.mxu0
  %1144 = vmatprep.subr.mxu0 %v1065
  %1145 = vmatpush1.msra.mxu0 %v1062
  %1146 = vmatprep.subr.mxu0 0.0
  %1147 = vmatpush1.msra.mxu0 0.0
  %1148 = vmatprep.subr.mxu0 0.0
  %1149 = vmatpush1.msra.mxu0 0.0
  %1150 = vmatprep.subr.mxu0 0.0
  %1151 = vmatpush1.msra.mxu0 0.0
  %1152 = vmatprep.subr.mxu0 0.0
  %1153 = vmatpush1.msra.mxu0 0.0
  %1154 = vmatprep.subr.mxu0 0.0
  %1155 = vmatpush1.msra.mxu0 0.0
  %1156 = vmatprep.subr.mxu0 0.0
  %1157 = vmatpush1.msra.mxu0 0.0
  %1158 = vmatprep.subr.mxu0 0.0
  %1159 = vmatpush1.msra.mxu0 0.0
  %1160 = vmatprep.subr.mxu0 0.0
  %1161 = vmatpush1.msra.mxu0 0.0
  %1162 = vmatprep.subr.mxu0 0.0
  %1163 = vmatpush1.msra.mxu0 0.0
  %1164 = vmatprep.subr.mxu0 0.0
  %1165 = vmatpush1.msra.mxu0 0.0
  %1166 = vmatprep.subr.mxu0 0.0
  %1167 = vmatpush1.msra.mxu0 0.0
  %1168 = vmatprep.subr.mxu0 0.0
  %1169 = vmatpush1.msra.mxu0 0.0
  %1170 = vmatprep.subr.mxu0 0.0
  %1171 = vmatpush1.msra.mxu0 0.0
  %1172 = vmatprep.subr.mxu0 0.0
  %1173 = vmatpush1.msra.mxu0 0.0
  %1174 = vmatprep.subr.mxu0 0.0
  %1175 = vmatpush1.msra.mxu0 0.0
  %1176 = vmatprep.subr.mxu0 0.0
  %1177 = vmatpush1.msra.mxu0 0.0
  %1178 = vmatprep.subr.mxu0 0.0
  %1179 = vmatpush1.msra.mxu0 0.0
  %1180 = vmatprep.subr.mxu0 0.0
  %1181 = vmatpush1.msra.mxu0 0.0
  %1182 = vmatprep.subr.mxu0 0.0
  %1183 = vmatpush1.msra.mxu0 0.0
  %1184 = vmatprep.subr.mxu0 0.0
  %1185 = vmatpush1.msra.mxu0 0.0
  %1186 = vmatprep.subr.mxu0 0.0
  %1187 = vmatpush1.msra.mxu0 0.0
  %1188 = vmatprep.subr.mxu0 0.0
  %1189 = vmatpush1.msra.mxu0 0.0
  %1190 = vmatprep.subr.mxu0 0.0
  %1191 = vmatpush1.msra.mxu0 0.0
  %1192 = vmatprep.subr.mxu0 0.0
  %1193 = vmatpush1.msra.mxu0 0.0
  %1194 = vmatprep.subr.mxu0 0.0
  %1195 = vmatpush1.msra.mxu0 0.0
  %1196 = vmatprep.subr.mxu0 0.0
  %1197 = vmatpush1.msra.mxu0 0.0
  %1198 = vmatprep.subr.mxu0 0.0
  %1199 = vmatpush1.msra.mxu0 0.0
  %1200 = vmatprep.subr.mxu0 0.0
  %1201 = vmatpush1.msra.mxu0 0.0
  %1202 = vmatprep.subr.mxu0 0.0
  %1203 = vmatpush1.msra.mxu0 0.0
  %1204 = vmatprep.subr.mxu0 0.0
  %1205 = vmatpush1.msra.mxu0 0.0
  %1206 = vmatprep.subr.mxu0 0.0
  %1207 = vmatpush1.msra.mxu0 0.0
  %1208 = vmatprep.mubr.f32.mxu0 0.0
  %1209 = vmatmul.mubr.f32.gmra.mrb[0].mxu0 %v1055
  %v1210 = vpop.f32.mrb[0].mxu0
  %v1211 = vadd.f32 %v1134, %v1210
  %v1212 = vpop.f32.mrb[0].mxu0
  %v1213 = vadd.f32 %v1136, %v1212
  %1214 = vmatprep.mubr.f32.mxu0 0.0
  %1215 = vmatmul.mubr.f32.gmra.mrb[0].mxu0 %v1058
  %v1216 = vpop.f32.mrb[0].mxu0
  %v1217 = vadd.f32 %v1140, %v1216
  %v1218 = vpop.f32.mrb[0].mxu0
  %v1219 = vadd.f32 %v1142, %v1218
  %1220 = vdwg.mxu0
  %v1221 = vmax.f32 %v1211, 0.0
  %v1222 = vmax.f32 %v1213, 0.0
  %v1223 = vmax.f32 %v1217, 0.0
  %v1224 = vmax.f32 %v1219, 0.0
  %v1225 = vld [vmem:[%s1 + $0x558] sm:$0xff]
  %v1226 = vld [vmem:[%s1 + $0x560] sm:$0xff]
  %v1227 = vld [vmem:[%s1 + $0x570] sm:$0xff]
  %v1228 = vld [vmem:[%s1 + $0x578] sm:$0xff]
  %v1229 = vld [vmem:[%s1 + $0x588] sm:$0xff]
  %v1230 = vld [vmem:[%s1 + $0x590] sm:$0xff]
  %v1231 = vld [vmem:[%s1 + $0x5a0] sm:$0xff]
  %v1232 = vld [vmem:[%s1 + $0x5a8] sm:$0xff]
  %v1233 = vld [vmem:[%s1 + $0x5b8] sm:$0xff]
  %v1234 = vld [vmem:[%s1 + $0x5c0] sm:$0xff]
  %v1235 = vld [vmem:[%s1 + $0x5d0] sm:$0xff]
  %v1236 = vld [vmem:[%s1 + $0x5d8] sm:$0xff]
  %v1237 = vld [vmem:[%s1 + $0x5e8] sm:$0xff]
  %v1238 = vld [vmem:[%s1 + $0x5f0] sm:$0xff]
  %v1239 = vld [vmem:[%s1 + $0x600] sm:$0xff]
  %v1240 = vld [vmem:[%s1 + $0x608] sm:$0xff]
  %v1241 = vld [vmem:[%s1 + $0x618] sm:$0xff]
  %v1242 = vld [vmem:[%s1 + $0x620] sm:$0xff]
  %v1243 = vld [vmem:[%s1 + $0x630] sm:$0xff]
  %v1244 = vld [vmem:[%s1 + $0x638] sm:$0xff]
  %v1245 = vld [vmem:[%s1 + $0x648] sm:$0xff]
  %v1246 = vld [vmem:[%s1 + $0x650] sm:$0xff]
  %v1247 = vld [vmem:[%s1 + $0x660] sm:$0xff]
  %v1248 = vld [vmem:[%s1 + $0x668] sm:$0xff]
  %v1249 = vld [vmem:[%s1 + $0x678] sm:$0xff]
  %v1250 = vld [vmem:[%s1 + $0x680] sm:$0xff]
  %v1251 = vld [vmem:[%s1 + $0x690] sm:$0xff]
  %v1252 = vld [vmem:[%s1 + $0x698] sm:$0xff]
  %v1253 = vld [vmem:[%s1 + $0x6a8] sm:$0xff]
  %v1254 = vld [vmem:[%s1 + $0x6b0] sm:$0xff]
  %v1255 = vld [vmem:[%s1 + $0x6c0] sm:$0xff]
  %v1256 = vld [vmem:[%s1 + $0x6c8] sm:$0xff]
  %v1257 = vld [vmem:[%s1 + $0x6d8] sm:$0x3]
  %v1258 = vld [vmem:[%s1 + $0x6e0] sm:$0x3]
  %v1259 = vld [vmem:[%s1 + $0x6f0] sm:$0xff]
  %v1260 = vld [vmem:[%s1 + $0x6f8] sm:$0xff]
  %v1261 = vld [vmem:[%s1 + $0x708] sm:$0xff]
  %v1262 = vld [vmem:[%s1 + $0x710] sm:$0xff]
  %v1263 = vld [vmem:[%s1 + $0x720] sm:$0xff]
  %v1264 = vld [vmem:[%s1 + $0x728] sm:$0xff]
  %v1265 = vld [vmem:[%s1 + $0x738] sm:$0xff]
  %v1266 = vld [vmem:[%s1 + $0x740] sm:$0xff]
  %v1267 = vld [vmem:[%s1 + $0x750] sm:$0xff]
  %v1268 = vld [vmem:[%s1 + $0x758] sm:$0xff]
  %v1269 = vld [vmem:[%s1 + $0x768] sm:$0xff]
  %v1270 = vld [vmem:[%s1 + $0x770] sm:$0xff]
  %v1271 = vld [vmem:[%s1 + $0x780] sm:$0xff]
  %v1272 = vld [vmem:[%s1 + $0x788] sm:$0xff]
  %v1273 = vld [vmem:[%s1 + $0x798] sm:$0xff]
  %v1274 = vld [vmem:[%s1 + $0x7a0] sm:$0xff]
  %v1275 = vld [vmem:[%s1 + $0x7b0] sm:$0xff]
  %v1276 = vld [vmem:[%s1 + $0x7b8] sm:$0xff]
  %v1277 = vld [vmem:[%s1 + $0x7c8] sm:$0xff]
  %v1278 = vld [vmem:[%s1 + $0x7d0] sm:$0xff]
  %v1279 = vld [vmem:[%s1 + $0x7e0] sm:$0xff]
  %v1280 = vld [vmem:[%s1 + $0x7e8] sm:$0xff]
  %v1281 = vld [vmem:[%s1 + $0x7f8] sm:$0xff]
  %v1282 = vld [vmem:[%s1 + $0x800] sm:$0xff]
  %v1283 = vld [vmem:[%s1 + $0x810] sm:$0xff]
  %v1284 = vld [vmem:[%s1 + $0x818] sm:$0xff]
  %v1285 = vld [vmem:[%s1 + $0x828] sm:$0xff]
  %v1286 = vld [vmem:[%s1 + $0x830] sm:$0xff]
  %v1287 = vld [vmem:[%s1 + $0x840] sm:$0xff]
  %v1288 = vld [vmem:[%s1 + $0x848] sm:$0xff]
  %v1289 = vld [vmem:[%s1 + $0x858] sm:$0xff]
  %v1290 = vld [vmem:[%s1 + $0x860] sm:$0xff]
  %v1291 = vld [vmem:[%s1 + $0x870] sm:$0x3]
  %v1292 = vld [vmem:[%s1 + $0x878] sm:$0x3]
  %v1297 = vrot.slane %v1221, 1
  %v1298 = vrot.slane %v1223, 1
  %v1299 = vsel %vm64, %v1297, %v1298
  %v1300 = vrot.slane %v1222, 1
  %v1301 = vrot.slane %v1224, 1
  %v1302 = vsel %vm64, %v1300, %v1301
  %vm1305 = vcmask 15360
  %v1306 = vsel %vm1305, %v1302, 0
  %v1308 = vsel %vm1305, %v1301, 0
  %vm1310 = vcmask 1041408
  %v1312 = vsel %vm1310, %v1291, 0
  %v1315 = vsel %vm1310, %v1292, 0
  %1317 = vmatprep.subr.mxu0 %v1260
  %1318 = vmatpush1.msra.mxu0 %v1259
  %1319 = vmatprep.subr.mxu0 %v1262
  %1320 = vmatpush1.msra.mxu0 %v1261
  %1321 = vmatprep.subr.mxu0 %v1264
  %1322 = vmatpush1.msra.mxu0 %v1263
  %1323 = vmatprep.subr.mxu0 %v1266
  %1324 = vmatpush1.msra.mxu0 %v1265
  %1325 = vmatprep.subr.mxu0 %v1268
  %1326 = vmatpush1.msra.mxu0 %v1267
  %1327 = vmatprep.subr.mxu0 %v1270
  %1328 = vmatpush1.msra.mxu0 %v1269
  %1329 = vmatprep.subr.mxu0 %v1272
  %1330 = vmatpush1.msra.mxu0 %v1271
  %1331 = vmatprep.subr.mxu0 %v1274
  %1332 = vmatpush1.msra.mxu0 %v1273
  %1333 = vmatprep.subr.mxu0 %v1276
  %1334 = vmatpush1.msra.mxu0 %v1275
  %1335 = vmatprep.subr.mxu0 %v1278
  %1336 = vmatpush1.msra.mxu0 %v1277
  %1337 = vmatprep.subr.mxu0 %v1280
  %1338 = vmatpush1.msra.mxu0 %v1279
  %1339 = vmatprep.subr.mxu0 %v1282
  %1340 = vmatpush1.msra.mxu0 %v1281
  %1341 = vmatprep.subr.mxu0 %v1284
  %1342 = vmatpush1.msra.mxu0 %v1283
  %1343 = vmatprep.subr.mxu0 %v1286
  %1344 = vmatpush1.msra.mxu0 %v1285
  %1345 = vmatprep.subr.mxu0 %v1288
  %1346 = vmatpush1.msra.mxu0 %v1287
  %1347 = vmatprep.subr.mxu0 %v1290
  %1348 = vmatpush1.msra.mxu0 %v1289
  %1349 = vmatprep.subr.mxu0 %v1315
  %1350 = vmatpush1.msra.mxu0 %v1312
  %1351 = vmatprep.subr.mxu0 0.0
  %1352 = vmatpush1.msra.mxu0 0.0
  %1353 = vmatprep.subr.mxu0 0.0
  %1354 = vmatpush1.msra.mxu0 0.0
  %1355 = vmatprep.subr.mxu0 0.0
  %1356 = vmatpush1.msra.mxu0 0.0
  %1357 = vmatprep.subr.mxu0 0.0
  %1358 = vmatpush1.msra.mxu0 0.0
  %1359 = vmatprep.subr.mxu0 0.0
  %1360 = vmatpush1.msra.mxu0 0.0
  %1361 = vmatprep.subr.mxu0 0.0
  %1362 = vmatpush1.msra.mxu0 0.0
  %1363 = vmatprep.subr.mxu0 0.0
  %1364 = vmatpush1.msra.mxu0 0.0
  %1365 = vmatprep.subr.mxu0 0.0
  %1366 = vmatpush1.msra.mxu0 0.0
  %1367 = vmatprep.subr.mxu0 0.0
  %1368 = vmatpush1.msra.mxu0 0.0
  %1369 = vmatprep.subr.mxu0 0.0
  %1370 = vmatpush1.msra.mxu0 0.0
  %1371 = vmatprep.subr.mxu0 0.0
  %1372 = vmatpush1.msra.mxu0 0.0
  %1373 = vmatprep.subr.mxu0 0.0
  %1374 = vmatpush1.msra.mxu0 0.0
  %1375 = vmatprep.subr.mxu0 0.0
  %1376 = vmatpush1.msra.mxu0 0.0
  %1377 = vmatprep.subr.mxu0 0.0
  %1378 = vmatpush1.msra.mxu0 0.0
  %1379 = vmatprep.subr.mxu0 0.0
  %1380 = vmatpush1.msra.mxu0 0.0
  %1381 = vmatprep.mubr.f32.mxu0 %v1306
  %1382 = vmatmul.mubr.f32.gmra.mrb[0].mxu0 %v1299
  %v1383 = vpop.f32.mrb[0].mxu0
  %v1384 = vadd.f32 0.0, %v1383
  %v1385 = vpop.f32.mrb[0].mxu0
  %v1386 = vadd.f32 0.0, %v1385
  %1387 = vmatprep.mubr.f32.mxu0 %v1308
  %1388 = vmatmul.mubr.f32.gmra.mrb[0].mxu0 %v1298
  %v1389 = vpop.f32.mrb[0].mxu0
  %v1390 = vadd.f32 0.0, %v1389
  %v1391 = vpop.f32.mrb[0].mxu0
  %v1392 = vadd.f32 0.0, %v1391
  %1393 = vdwg.mxu0
  %v1394 = vsel %vm1305, %v1222, 0
  %v1396 = vsel %vm1305, %v1224, 0
  %v1399 = vsel %vm1310, %v1257, 0
  %v1402 = vsel %vm1310, %v1258, 0
  %1404 = vmatprep.subr.mxu0 %v1226
  %1405 = vmatpush1.msra.mxu0 %v1225
  %1406 = vmatprep.subr.mxu0 %v1228
  %1407 = vmatpush1.msra.mxu0 %v1227
  %1408 = vmatprep.subr.mxu0 %v1230
  %1409 = vmatpush1.msra.mxu0 %v1229
  %1410 = vmatprep.subr.mxu0 %v1232
  %1411 = vmatpush1.msra.mxu0 %v1231
  %1412 = vmatprep.subr.mxu0 %v1234
  %1413 = vmatpush1.msra.mxu0 %v1233
  %1414 = vmatprep.subr.mxu0 %v1236
  %1415 = vmatpush1.msra.mxu0 %v1235
  %1416 = vmatprep.subr.mxu0 %v1238
  %1417 = vmatpush1.msra.mxu0 %v1237
  %1418 = vmatprep.subr.mxu0 %v1240
  %1419 = vmatpush1.msra.mxu0 %v1239
  %1420 = vmatprep.subr.mxu0 %v1242
  %1421 = vmatpush1.msra.mxu0 %v1241
  %1422 = vmatprep.subr.mxu0 %v1244
  %1423 = vmatpush1.msra.mxu0 %v1243
  %1424 = vmatprep.subr.mxu0 %v1246
  %1425 = vmatpush1.msra.mxu0 %v1245
  %1426 = vmatprep.subr.mxu0 %v1248
  %1427 = vmatpush1.msra.mxu0 %v1247
  %1428 = vmatprep.subr.mxu0 %v1250
  %1429 = vmatpush1.msra.mxu0 %v1249
  %1430 = vmatprep.subr.mxu0 %v1252
  %1431 = vmatpush1.msra.mxu0 %v1251
  %1432 = vmatprep.subr.mxu0 %v1254
  %1433 = vmatpush1.msra.mxu0 %v1253
  %1434 = vmatprep.subr.mxu0 %v1256
  %1435 = vmatpush1.msra.mxu0 %v1255
  %1436 = vmatprep.subr.mxu0 %v1402
  %1437 = vmatpush1.msra.mxu0 %v1399
  %1438 = vmatprep.subr.mxu0 0.0
  %1439 = vmatpush1.msra.mxu0 0.0
  %1440 = vmatprep.subr.mxu0 0.0
  %1441 = vmatpush1.msra.mxu0 0.0
  %1442 = vmatprep.subr.mxu0 0.0
  %1443 = vmatpush1.msra.mxu0 0.0
  %1444 = vmatprep.subr.mxu0 0.0
  %1445 = vmatpush1.msra.mxu0 0.0
  %1446 = vmatprep.subr.mxu0 0.0
  %1447 = vmatpush1.msra.mxu0 0.0
  %1448 = vmatprep.subr.mxu0 0.0
  %1449 = vmatpush1.msra.mxu0 0.0
  %1450 = vmatprep.subr.mxu0 0.0
  %1451 = vmatpush1.msra.mxu0 0.0
  %1452 = vmatprep.subr.mxu0 0.0
  %1453 = vmatpush1.msra.mxu0 0.0
  %1454 = vmatprep.subr.mxu0 0.0
  %1455 = vmatpush1.msra.mxu0 0.0
  %1456 = vmatprep.subr.mxu0 0.0
  %1457 = vmatpush1.msra.mxu0 0.0
  %1458 = vmatprep.subr.mxu0 0.0
  %1459 = vmatpush1.msra.mxu0 0.0
  %1460 = vmatprep.subr.mxu0 0.0
  %1461 = vmatpush1.msra.mxu0 0.0
  %1462 = vmatprep.subr.mxu0 0.0
  %1463 = vmatpush1.msra.mxu0 0.0
  %1464 = vmatprep.subr.mxu0 0.0
  %1465 = vmatpush1.msra.mxu0 0.0
  %1466 = vmatprep.subr.mxu0 0.0
  %1467 = vmatpush1.msra.mxu0 0.0
  %1468 = vmatprep.mubr.f32.mxu0 %v1394
  %1469 = vmatmul.mubr.f32.gmra.mrb[0].mxu0 %v1221
  %v1470 = vpop.f32.mrb[0].mxu0
  %v1471 = vadd.f32 %v1384, %v1470
  %v1472 = vpop.f32.mrb[0].mxu0
  %v1473 = vadd.f32 %v1386, %v1472
  %1474 = vmatprep.mubr.f32.mxu0 %v1396
  %1475 = vmatmul.mubr.f32.gmra.mrb[0].mxu0 %v1223
  %v1476 = vpop.f32.mrb[0].mxu0
  %v1477 = vadd.f32 %v1390, %v1476
  %v1478 = vpop.f32.mrb[0].mxu0
  %v1479 = vadd.f32 %v1392, %v1478
  %1480 = vdwg.mxu0
  %v1481 = vld [vmem:[%s1 + $0x888] sm:$0xff]
  %v1482 = vld [vmem:[%s1 + $0x890] sm:$0xff]
  %v1483 = vld [vmem:[%s1 + $0x8a0] sm:$0xff]
  %v1484 = vld [vmem:[%s1 + $0x8a8] sm:$0xff]
  %v1485 = vld [vmem:[%s1 + $0x8b8] sm:$0xff]
  %v1486 = vld [vmem:[%s1 + $0x8c0] sm:$0xff]
  %v1487 = vld [vmem:[%s1 + $0x8d0] sm:$0xff]
  %v1488 = vld [vmem:[%s1 + $0x8d8] sm:$0xff]
  %v1489 = vld [vmem:[%s1 + $0x8e8] sm:$0xff]
  %v1490 = vld [vmem:[%s1 + $0x8f0] sm:$0xff]
  %v1491 = vld [vmem:[%s1 + $0x900] sm:$0xff]
  %v1492 = vld [vmem:[%s1 + $0x908] sm:$0xff]
  %v1493 = vld [vmem:[%s1 + $0x918] sm:$0xff]
  %v1494 = vld [vmem:[%s1 + $0x920] sm:$0xff]
  %v1495 = vld [vmem:[%s1 + $0x930] sm:$0xff]
  %v1496 = vld [vmem:[%s1 + $0x938] sm:$0xff]
  %v1497 = vld [vmem:[%s1 + $0x948] sm:$0xff]
  %v1498 = vld [vmem:[%s1 + $0x950] sm:$0xff]
  %v1499 = vld [vmem:[%s1 + $0x960] sm:$0xff]
  %v1500 = vld [vmem:[%s1 + $0x968] sm:$0xff]
  %v1501 = vld [vmem:[%s1 + $0x978] sm:$0xff]
  %v1502 = vld [vmem:[%s1 + $0x980] sm:$0xff]
  %v1503 = vld [vmem:[%s1 + $0x990] sm:$0xff]
  %v1504 = vld [vmem:[%s1 + $0x998] sm:$0xff]
  %v1505 = vld [vmem:[%s1 + $0x9a8] sm:$0xff]
  %v1506 = vld [vmem:[%s1 + $0x9b0] sm:$0xff]
  %v1507 = vld [vmem:[%s1 + $0x9c0] sm:$0xff]
  %v1508 = vld [vmem:[%s1 + $0x9c8] sm:$0xff]
  %v1509 = vld [vmem:[%s1 + $0x9d8] sm:$0xff]
  %v1510 = vld [vmem:[%s1 + $0x9e0] sm:$0xff]
  %v1511 = vld [vmem:[%s1 + $0x9f0] sm:$0xff]
  %v1512 = vld [vmem:[%s1 + $0x9f8] sm:$0xff]
  %v1513 = vld [vmem:[%s1 + $0xa08] sm:$0x3]
  %v1514 = vld [vmem:[%s1 + $0xa10] sm:$0x3]
  %v1515 = vrot.slane %v1221, 2
  %v1516 = vrot.slane %v1223, 2
  %v1517 = vsel %vm458, %v1515, %v1516
  %v1518 = vrot.slane %v1222, 2
  %v1519 = vrot.slane %v1224, 2
  %v1520 = vsel %vm458, %v1518, %v1519
  %v1523 = vsel %vm1305, %v1520, 0
  %v1525 = vsel %vm1305, %v1519, 0
  %v1528 = vsel %vm1310, %v1513, 0
  %v1531 = vsel %vm1310, %v1514, 0
  %1533 = vmatprep.subr.mxu0 %v1482
  %1534 = vmatpush1.msra.mxu0 %v1481
  %1535 = vmatprep.subr.mxu0 %v1484
  %1536 = vmatpush1.msra.mxu0 %v1483
  %1537 = vmatprep.subr.mxu0 %v1486
  %1538 = vmatpush1.msra.mxu0 %v1485
  %1539 = vmatprep.subr.mxu0 %v1488
  %1540 = vmatpush1.msra.mxu0 %v1487
  %1541 = vmatprep.subr.mxu0 %v1490
  %1542 = vmatpush1.msra.mxu0 %v1489
  %1543 = vmatprep.subr.mxu0 %v1492
  %1544 = vmatpush1.msra.mxu0 %v1491
  %1545 = vmatprep.subr.mxu0 %v1494
  %1546 = vmatpush1.msra.mxu0 %v1493
  %1547 = vmatprep.subr.mxu0 %v1496
  %1548 = vmatpush1.msra.mxu0 %v1495
  %1549 = vmatprep.subr.mxu0 %v1498
  %1550 = vmatpush1.msra.mxu0 %v1497
  %1551 = vmatprep.subr.mxu0 %v1500
  %1552 = vmatpush1.msra.mxu0 %v1499
  %1553 = vmatprep.subr.mxu0 %v1502
  %1554 = vmatpush1.msra.mxu0 %v1501
  %1555 = vmatprep.subr.mxu0 %v1504
  %1556 = vmatpush1.msra.mxu0 %v1503
  %1557 = vmatprep.subr.mxu0 %v1506
  %1558 = vmatpush1.msra.mxu0 %v1505
  %1559 = vmatprep.subr.mxu0 %v1508
  %1560 = vmatpush1.msra.mxu0 %v1507
  %1561 = vmatprep.subr.mxu0 %v1510
  %1562 = vmatpush1.msra.mxu0 %v1509
  %1563 = vmatprep.subr.mxu0 %v1512
  %1564 = vmatpush1.msra.mxu0 %v1511
  %1565 = vmatprep.subr.mxu0 %v1531
  %1566 = vmatpush1.msra.mxu0 %v1528
  %1567 = vmatprep.subr.mxu0 0.0
  %1568 = vmatpush1.msra.mxu0 0.0
  %1569 = vmatprep.subr.mxu0 0.0
  %1570 = vmatpush1.msra.mxu0 0.0
  %1571 = vmatprep.subr.mxu0 0.0
  %1572 = vmatpush1.msra.mxu0 0.0
  %1573 = vmatprep.subr.mxu0 0.0
  %1574 = vmatpush1.msra.mxu0 0.0
  %1575 = vmatprep.subr.mxu0 0.0
  %1576 = vmatpush1.msra.mxu0 0.0
  %1577 = vmatprep.subr.mxu0 0.0
  %1578 = vmatpush1.msra.mxu0 0.0
  %1579 = vmatprep.subr.mxu0 0.0
  %1580 = vmatpush1.msra.mxu0 0.0
  %1581 = vmatprep.subr.mxu0 0.0
  %1582 = vmatpush1.msra.mxu0 0.0
  %1583 = vmatprep.subr.mxu0 0.0
  %1584 = vmatpush1.msra.mxu0 0.0
  %1585 = vmatprep.subr.mxu0 0.0
  %1586 = vmatpush1.msra.mxu0 0.0
  %1587 = vmatprep.subr.mxu0 0.0
  %1588 = vmatpush1.msra.mxu0 0.0
  %1589 = vmatprep.subr.mxu0 0.0
  %1590 = vmatpush1.msra.mxu0 0.0
  %1591 = vmatprep.subr.mxu0 0.0
  %1592 = vmatpush1.msra.mxu0 0.0
  %1593 = vmatprep.subr.mxu0 0.0
  %1594 = vmatpush1.msra.mxu0 0.0
  %1595 = vmatprep.subr.mxu0 0.0
  %1596 = vmatpush1.msra.mxu0 0.0
  %1597 = vmatprep.mubr.f32.mxu0 %v1523
  %1598 = vmatmul.mubr.f32.gmra.mrb[0].mxu0 %v1517
  %v1599 = vpop.f32.mrb[0].mxu0
  %v1600 = vadd.f32 0.0, %v1599
  %v1601 = vpop.f32.mrb[0].mxu0
  %v1602 = vadd.f32 0.0, %v1601
  %1603 = vmatprep.mubr.f32.mxu0 %v1525
  %1604 = vmatmul.mubr.f32.gmra.mrb[0].mxu0 %v1516
  %v1605 = vpop.f32.mrb[0].mxu0
  %v1606 = vadd.f32 0.0, %v1605
  %v1607 = vpop.f32.mrb[0].mxu0
  %v1608 = vadd.f32 0.0, %v1607
  %1609 = vdwg.mxu0
  %v1610 = vadd.f32 %v1471, %v1600
  %v1611 = vadd.f32 %v1473, %v1602
  %v1612 = vadd.f32 %v1477, %v1606
  %v1613 = vadd.f32 %v1479, %v1608
  %s1614 = scalar_lea.vmem %s1, 2592
  %v1615 = vld [vmem:[%s1614] ss:$8 sm:$0x3]
  %v1617 = vlaneseq
  %v1618 = vshrl.u32 %v1617, 7
  %v1619 = vsub.s32 0, %v1618
  %v1620 = vrot.slane %v1615, %v1619
  %v1621 = vlaneseq
  %v1622 = vshrl.u32 %v1621, 7
  %v1623 = vsub.s32 1, %v1622
  %v1624 = vrot.slane %v1615, %v1623
  %v1627 = vadd.f32 %v1610, %v1620
  %v1628 = vadd.f32 %v1611, %v1624
  %v1629 = vadd.f32 %v1612, %v1620
  %v1630 = vadd.f32 %v1613, %v1624
  %v1635 = vrot.slane %v1627, 1
  %v1636 = vrot.slane %v1629, 1
  %v1637 = vsel %vm64, %v1635, %v1636
  %v1638 = vrot.slane %v1628, 1
  %v1639 = vrot.slane %v1630, 1
  %v1640 = vsel %vm64, %v1638, %v1639
  %v1645 = vmax.f32 %v1627, %v1637
  %v1646 = vmax.f32 %v1628, %v1640
  %v1647 = vmax.f32 %v1629, %v1636
  %v1648 = vmax.f32 %v1630, %v1639
  %1653 = vrot.lane.b32.xlu0 %v1645, 127
  %v1654 = vpop.permute.xlu0 %1653
  %1655 = vrot.lane.b32.xlu0 %v1646, 127
  %v1656 = vpop.permute.xlu0 %1655
  %1657 = vrot.lane.b32.xlu0 %v1647, 127
  %v1658 = vpop.permute.xlu0 %1657
  %1659 = vrot.lane.b32.xlu0 %v1648, 127
  %v1660 = vpop.permute.xlu0 %1659
  %v1661 = vsel %vm783, %v1654, %v1656
  %v1662 = vsel %vm783, %v1658, %v1660
  %v1667 = vmax.f32 %v1645, %v1661
  %v1668 = vmax.f32 %v1646, %v1656
  %v1669 = vmax.f32 %v1647, %v1662
  %v1670 = vmax.f32 %v1648, %v1660
  %v1671 = vmax.f32 %v1667, 0.0
  %v1672 = vmax.f32 %v1668, 0.0
  %v1673 = vmax.f32 %v1669, 0.0
  %v1674 = vmax.f32 %v1670, 0.0
  %v1675 = vld [vmem:[%s2] sm:$0xff]
  %v1676 = vld [vmem:[%s2 + $0x8] sm:$0xff]
  %v1677 = vld [vmem:[%s2 + $0x10] sm:$0xff]
  %v1678 = vld [vmem:[%s2 + $0x18] sm:$0xff]
  %v1679 = vld [vmem:[%s2 + $0x20] sm:$0xff]
  %v1680 = vld [vmem:[%s2 + $0x28] sm:$0xff]
  %v1681 = vld [vmem:[%s2 + $0x30] sm:$0xff]
  %v1682 = vld [vmem:[%s2 + $0x38] sm:$0xff]
  %v1683 = vld [vmem:[%s2 + $0x40] sm:$0xff]
  %v1684 = vld [vmem:[%s2 + $0x48] sm:$0xff]
  %v1685 = vld [vmem:[%s2 + $0x50] sm:$0xff]
  %v1686 = vld [vmem:[%s2 + $0x58] sm:$0xff]
  %v1687 = vld [vmem:[%s2 + $0x60] sm:$0xff]
  %v1688 = vld [vmem:[%s2 + $0x68] sm:$0xff]
  %v1689 = vld [vmem:[%s2 + $0x70] sm:$0xff]
  %v1690 = vld [vmem:[%s2 + $0x78] sm:$0xff]
  %v1691 = vld [vmem:[%s2 + $0x80] sm:$0xff]
  %v1692 = vld [vmem:[%s2 + $0x88] sm:$0xff]
  %v1693 = vld [vmem:[%s2 + $0x90] sm:$0xff]
  %v1694 = vld [vmem:[%s2 + $0x98] sm:$0xff]
  %v1695 = vld [vmem:[%s2 + $0xa0] sm:$0xff]
  %v1696 = vld [vmem:[%s2 + $0xa8] sm:$0xff]
  %v1697 = vld [vmem:[%s2 + $0xb0] sm:$0xff]
  %v1698 = vld [vmem:[%s2 + $0xb8] sm:$0xff]
  %v1699 = vld [vmem:[%s2 + $0xc0] sm:$0xff]
  %v1700 = vld [vmem:[%s2 + $0xc8] sm:$0xff]
  %v1701 = vld [vmem:[%s2 + $0xd0] sm:$0xff]
  %v1702 = vld [vmem:[%s2 + $0xd8] sm:$0x7]
  %s1703 = scalar_lea.vmem %s2, 224
  %v1704 = vld [vmem:[%s1703] sm:$0xff]
  %v1705 = vld [vmem:[%s1703 + $0x8] sm:$0xff]
  %v1706 = vld [vmem:[%s1703 + $0x10] sm:$0xff]
  %v1707 = vld [vmem:[%s1703 + $0x18] sm:$0xff]
  %v1708 = vld [vmem:[%s1703 + $0x20] sm:$0xff]
  %v1709 = vld [vmem:[%s1703 + $0x28] sm:$0xff]
  %v1710 = vld [vmem:[%s1703 + $0x30] sm:$0xff]
  %v1711 = vld [vmem:[%s1703 + $0x38] sm:$0xff]
  %v1712 = vld [vmem:[%s1703 + $0x40] sm:$0xff]
  %v1713 = vld [vmem:[%s1703 + $0x48] sm:$0xff]
  %v1714 = vld [vmem:[%s1703 + $0x50] sm:$0xff]
  %v1715 = vld [vmem:[%s1703 + $0x58] sm:$0xff]
  %v1716 = vld [vmem:[%s1703 + $0x60] sm:$0xff]
  %v1717 = vld [vmem:[%s1703 + $0x68] sm:$0xff]
  %v1718 = vld [vmem:[%s1703 + $0x70] sm:$0xff]
  %v1719 = vld [vmem:[%s1703 + $0x78] sm:$0xff]
  %v1720 = vld [vmem:[%s1703 + $0x80] sm:$0xff]
  %v1721 = vld [vmem:[%s1703 + $0x88] sm:$0xff]
  %v1722 = vld [vmem:[%s1703 + $0x90] sm:$0xff]
  %v1723 = vld [vmem:[%s1703 + $0x98] sm:$0xff]
  %v1724 = vld [vmem:[%s1703 + $0xa0] sm:$0xff]
  %v1725 = vld [vmem:[%s1703 + $0xa8] sm:$0xff]
  %v1726 = vld [vmem:[%s1703 + $0xb0] sm:$0xff]
  %v1727 = vld [vmem:[%s1703 + $0xb8] sm:$0xff]
  %v1728 = vld [vmem:[%s1703 + $0xc0] sm:$0xff]
  %v1729 = vld [vmem:[%s1703 + $0xc8] sm:$0xff]
  %v1730 = vld [vmem:[%s1703 + $0xd0] sm:$0xff]
  %v1731 = vld [vmem:[%s1703 + $0xd8] sm:$0x7]
  %v1734 = vrot.slane %v1671, 2
  %v1735 = vrot.slane %v1672, 2
  %vm1737 = vcmask 744448
  %v1738 = vsel %vm1737, %v1735, 0
  %v1741 = vsel %vm1060, %v1731, 0
  %1743 = vmatprep.subr.mxu0 0.0
  %1744 = vmatpush1.msra.mxu0 %v1704
  %1745 = vmatprep.subr.mxu0 0.0
  %1746 = vmatpush1.msra.mxu0 %v1705
  %1747 = vmatprep.subr.mxu0 0.0
  %1748 = vmatpush1.msra.mxu0 %v1706
  %1749 = vmatprep.subr.mxu0 0.0
  %1750 = vmatpush1.msra.mxu0 %v1707
  %1751 = vmatprep.subr.mxu0 0.0
  %1752 = vmatpush1.msra.mxu0 %v1708
  %1753 = vmatprep.subr.mxu0 0.0
  %1754 = vmatpush1.msra.mxu0 %v1709
  %1755 = vmatprep.subr.mxu0 0.0
  %1756 = vmatpush1.msra.mxu0 %v1710
  %1757 = vmatprep.subr.mxu0 0.0
  %1758 = vmatpush1.msra.mxu0 %v1711
  %1759 = vmatprep.subr.mxu0 0.0
  %1760 = vmatpush1.msra.mxu0 %v1712
  %1761 = vmatprep.subr.mxu0 0.0
  %1762 = vmatpush1.msra.mxu0 %v1713
  %1763 = vmatprep.subr.mxu0 0.0
  %1764 = vmatpush1.msra.mxu0 %v1714
  %1765 = vmatprep.subr.mxu0 0.0
  %1766 = vmatpush1.msra.mxu0 %v1715
  %1767 = vmatprep.subr.mxu0 0.0
  %1768 = vmatpush1.msra.mxu0 %v1716
  %1769 = vmatprep.subr.mxu0 0.0
  %1770 = vmatpush1.msra.mxu0 %v1717
  %1771 = vmatprep.subr.mxu0 0.0
  %1772 = vmatpush1.msra.mxu0 %v1718
  %1773 = vmatprep.subr.mxu0 0.0
  %1774 = vmatpush1.msra.mxu0 %v1719
  %1775 = vmatprep.subr.mxu0 0.0
  %1776 = vmatpush1.msra.mxu0 %v1720
  %1777 = vmatprep.subr.mxu0 0.0
  %1778 = vmatpush1.msra.mxu0 %v1721
  %1779 = vmatprep.subr.mxu0 0.0
  %1780 = vmatpush1.msra.mxu0 %v1722
  %1781 = vmatprep.subr.mxu0 0.0
  %1782 = vmatpush1.msra.mxu0 %v1723
  %1783 = vmatprep.subr.mxu0 0.0
  %1784 = vmatpush1.msra.mxu0 %v1724
  %1785 = vmatprep.subr.mxu0 0.0
  %1786 = vmatpush1.msra.mxu0 %v1725
  %1787 = vmatprep.subr.mxu0 0.0
  %1788 = vmatpush1.msra.mxu0 %v1726
  %1789 = vmatprep.subr.mxu0 0.0
  %1790 = vmatpush1.msra.mxu0 %v1727
  %1791 = vmatprep.subr.mxu0 0.0
  %1792 = vmatpush1.msra.mxu0 %v1728
  %1793 = vmatprep.subr.mxu0 0.0
  %1794 = vmatpush1.msra.mxu0 %v1729
  %1795 = vmatprep.subr.mxu0 0.0
  %1796 = vmatpush1.msra.mxu0 %v1730
  %1797 = vmatprep.subr.mxu0 0.0
  %1798 = vmatpush1.msra.mxu0 %v1741
  %1799 = vmatprep.subr.mxu0 0.0
  %1800 = vmatpush1.msra.mxu0 0.0
  %1801 = vmatprep.subr.mxu0 0.0
  %1802 = vmatpush1.msra.mxu0 0.0
  %1803 = vmatprep.subr.mxu0 0.0
  %1804 = vmatpush1.msra.mxu0 0.0
  %1805 = vmatprep.subr.mxu0 0.0
  %1806 = vmatpush1.msra.mxu0 0.0
  %1807 = vmatprep.mubr.f32.mxu0 %v1738
  %1808 = vmatmul.mubr.f32.gmra.mrb[0].mxu0 %v1734
  %v1809 = vpop.f32.mrb[0].mxu0
  %v1810 = vadd.f32 0.0, %v1809
  %v1811 = vpop.f32.mrb[0].mxu0
  %1812 = vdwg.mxu0
  %s1813 = scalar_lea.vmem %s2, 448
  %v1814 = vld [vmem:[%s1813] sm:$0xff]
  %v1815 = vld [vmem:[%s1813 + $0x8] sm:$0xff]
  %v1816 = vld [vmem:[%s1813 + $0x10] sm:$0xff]
  %v1817 = vld [vmem:[%s1813 + $0x18] sm:$0xff]
  %v1818 = vld [vmem:[%s1813 + $0x20] sm:$0xff]
  %v1819 = vld [vmem:[%s1813 + $0x28] sm:$0xff]
  %v1820 = vld [vmem:[%s1813 + $0x30] sm:$0xff]
  %v1821 = vld [vmem:[%s1813 + $0x38] sm:$0xff]
  %v1822 = vld [vmem:[%s1813 + $0x40] sm:$0xff]
  %v1823 = vld [vmem:[%s1813 + $0x48] sm:$0xff]
  %v1824 = vld [vmem:[%s1813 + $0x50] sm:$0xff]
  %v1825 = vld [vmem:[%s1813 + $0x58] sm:$0xff]
  %v1826 = vld [vmem:[%s1813 + $0x60] sm:$0xff]
  %v1827 = vld [vmem:[%s1813 + $0x68] sm:$0xff]
  %v1828 = vld [vmem:[%s1813 + $0x70] sm:$0xff]
  %v1829 = vld [vmem:[%s1813 + $0x78] sm:$0xff]
  %v1830 = vld [vmem:[%s1813 + $0x80] sm:$0xff]
  %v1831 = vld [vmem:[%s1813 + $0x88] sm:$0xff]
  %v1832 = vld [vmem:[%s1813 + $0x90] sm:$0xff]
  %v1833 = vld [vmem:[%s1813 + $0x98] sm:$0xff]
  %v1834 = vld [vmem:[%s1813 + $0xa0] sm:$0xff]
  %v1835 = vld [vmem:[%s1813 + $0xa8] sm:$0xff]
  %v1836 = vld [vmem:[%s1813 + $0xb0] sm:$0xff]
  %v1837 = vld [vmem:[%s1813 + $0xb8] sm:$0xff]
  %v1838 = vld [vmem:[%s1813 + $0xc0] sm:$0xff]
  %v1839 = vld [vmem:[%s1813 + $0xc8] sm:$0xff]
  %v1840 = vld [vmem:[%s1813 + $0xd0] sm:$0xff]
  %v1841 = vld [vmem:[%s1813 + $0xd8] sm:$0x7]
  %s1842 = scalar_lea.vmem %s2, 672
  %v1843 = vld [vmem:[%s1842] sm:$0xff]
  %v1844 = vld [vmem:[%s1842 + $0x8] sm:$0xff]
  %v1845 = vld [vmem:[%s1842 + $0x10] sm:$0xff]
  %v1846 = vld [vmem:[%s1842 + $0x18] sm:$0xff]
  %v1847 = vld [vmem:[%s1842 + $0x20] sm:$0xff]
  %v1848 = vld [vmem:[%s1842 + $0x28] sm:$0xff]
  %v1849 = vld [vmem:[%s1842 + $0x30] sm:$0xff]
  %v1850 = vld [vmem:[%s1842 + $0x38] sm:$0xff]
  %v1851 = vld [vmem:[%s1842 + $0x40] sm:$0xff]
  %v1852 = vld [vmem:[%s1842 + $0x48] sm:$0xff]
  %v1853 = vld [vmem:[%s1842 + $0x50] sm:$0xff]
  %v1854 = vld [vmem:[%s1842 + $0x58] sm:$0xff]
  %v1855 = vld [vmem:[%s1842 + $0x60] sm:$0xff]
  %v1856 = vld [vmem:[%s1842 + $0x68] sm:$0xff]
  %v1857 = vld [vmem:[%s1842 + $0x70] sm:$0xff]
  %v1858 = vld [vmem:[%s1842 + $0x78] sm:$0xff]
  %v1859 = vld [vmem:[%s1842 + $0x80] sm:$0xff]
  %v1860 = vld [vmem:[%s1842 + $0x88] sm:$0xff]
  %v1861 = vld [vmem:[%s1842 + $0x90] sm:$0xff]
  %v1862 = vld [vmem:[%s1842 + $0x98] sm:$0xff]
  %v1863 = vld [vmem:[%s1842 + $0xa0] sm:$0xff]
  %v1864 = vld [vmem:[%s1842 + $0xa8] sm:$0xff]
  %v1865 = vld [vmem:[%s1842 + $0xb0] sm:$0xff]
  %v1866 = vld [vmem:[%s1842 + $0xb8] sm:$0xff]
  %v1867 = vld [vmem:[%s1842 + $0xc0] sm:$0xff]
  %v1868 = vld [vmem:[%s1842 + $0xc8] sm:$0xff]
  %v1869 = vld [vmem:[%s1842 + $0xd0] sm:$0xff]
  %v1870 = vld [vmem:[%s1842 + $0xd8] sm:$0x7]
  %v1871 = vrot.slane %v1671, 6
  %v1872 = vrot.slane %v1672, 6
  %v1874 = vsel %vm1737, %v1872, 0
  %v1877 = vsel %vm1060, %v1870, 0
  %1879 = vmatprep.subr.mxu0 0.0
  %1880 = vmatpush1.msra.mxu0 %v1843
  %1881 = vmatprep.subr.mxu0 0.0
  %1882 = vmatpush1.msra.mxu0 %v1844
  %1883 = vmatprep.subr.mxu0 0.0
  %1884 = vmatpush1.msra.mxu0 %v1845
  %1885 = vmatprep.subr.mxu0 0.0
  %1886 = vmatpush1.msra.mxu0 %v1846
  %1887 = vmatprep.subr.mxu0 0.0
  %1888 = vmatpush1.msra.mxu0 %v1847
  %1889 = vmatprep.subr.mxu0 0.0
  %1890 = vmatpush1.msra.mxu0 %v1848
  %1891 = vmatprep.subr.mxu0 0.0
  %1892 = vmatpush1.msra.mxu0 %v1849
  %1893 = vmatprep.subr.mxu0 0.0
  %1894 = vmatpush1.msra.mxu0 %v1850
  %1895 = vmatprep.subr.mxu0 0.0
  %1896 = vmatpush1.msra.mxu0 %v1851
  %1897 = vmatprep.subr.mxu0 0.0
  %1898 = vmatpush1.msra.mxu0 %v1852
  %1899 = vmatprep.subr.mxu0 0.0
  %1900 = vmatpush1.msra.mxu0 %v1853
  %1901 = vmatprep.subr.mxu0 0.0
  %1902 = vmatpush1.msra.mxu0 %v1854
  %1903 = vmatprep.subr.mxu0 0.0
  %1904 = vmatpush1.msra.mxu0 %v1855
  %1905 = vmatprep.subr.mxu0 0.0
  %1906 = vmatpush1.msra.mxu0 %v1856
  %1907 = vmatprep.subr.mxu0 0.0
  %1908 = vmatpush1.msra.mxu0 %v1857
  %1909 = vmatprep.subr.mxu0 0.0
  %1910 = vmatpush1.msra.mxu0 %v1858
  %1911 = vmatprep.subr.mxu0 0.0
  %1912 = vmatpush1.msra.mxu0 %v1859
  %1913 = vmatprep.subr.mxu0 0.0
  %1914 = vmatpush1.msra.mxu0 %v1860
  %1915 = vmatprep.subr.mxu0 0.0
  %1916 = vmatpush1.msra.mxu0 %v1861
  %1917 = vmatprep.subr.mxu0 0.0
  %1918 = vmatpush1.msra.mxu0 %v1862
  %1919 = vmatprep.subr.mxu0 0.0
  %1920 = vmatpush1.msra.mxu0 %v1863
  %1921 = vmatprep.subr.mxu0 0.0
  %1922 = vmatpush1.msra.mxu0 %v1864
  %1923 = vmatprep.subr.mxu0 0.0
  %1924 = vmatpush1.msra.mxu0 %v1865
  %1925 = vmatprep.subr.mxu0 0.0
  %1926 = vmatpush1.msra.mxu0 %v1866
  %1927 = vmatprep.subr.mxu0 0.0
  %1928 = vmatpush1.msra.mxu0 %v1867
  %1929 = vmatprep.subr.mxu0 0.0
  %1930 = vmatpush1.msra.mxu0 %v1868
  %1931 = vmatprep.subr.mxu0 0.0
  %1932 = vmatpush1.msra.mxu0 %v1869
  %1933 = vmatprep.subr.mxu0 0.0
  %1934 = vmatpush1.msra.mxu0 %v1877
  %1935 = vmatprep.subr.mxu0 0.0
  %1936 = vmatpush1.msra.mxu0 0.0
  %1937 = vmatprep.subr.mxu0 0.0
  %1938 = vmatpush1.msra.mxu0 0.0
  %1939 = vmatprep.subr.mxu0 0.0
  %1940 = vmatpush1.msra.mxu0 0.0
  %1941 = vmatprep.subr.mxu0 0.0
  %1942 = vmatpush1.msra.mxu0 0.0
  %1943 = vmatprep.mubr.f32.mxu0 %v1874
  %1944 = vmatmul.mubr.f32.gmra.mrb[0].mxu0 %v1871
  %v1945 = vpop.f32.mrb[0].mxu0
  %v1946 = vadd.f32 0.0, %v1945
  %v1947 = vpop.f32.mrb[0].mxu0
  %1948 = vdwg.mxu0
  %s1949 = scalar_lea.vmem %s2, 896
  %v1950 = vld [vmem:[%s1949] sm:$0xff]
  %v1951 = vld [vmem:[%s1949 + $0x8] sm:$0xff]
  %v1952 = vld [vmem:[%s1949 + $0x10] sm:$0xff]
  %v1953 = vld [vmem:[%s1949 + $0x18] sm:$0xff]
  %v1954 = vld [vmem:[%s1949 + $0x20] sm:$0xff]
  %v1955 = vld [vmem:[%s1949 + $0x28] sm:$0xff]
  %v1956 = vld [vmem:[%s1949 + $0x30] sm:$0xff]
  %v1957 = vld [vmem:[%s1949 + $0x38] sm:$0xff]
  %v1958 = vld [vmem:[%s1949 + $0x40] sm:$0xff]
  %v1959 = vld [vmem:[%s1949 + $0x48] sm:$0xff]
  %v1960 = vld [vmem:[%s1949 + $0x50] sm:$0xff]
  %v1961 = vld [vmem:[%s1949 + $0x58] sm:$0xff]
  %v1962 = vld [vmem:[%s1949 + $0x60] sm:$0xff]
  %v1963 = vld [vmem:[%s1949 + $0x68] sm:$0xff]
  %v1964 = vld [vmem:[%s1949 + $0x70] sm:$0xff]
  %v1965 = vld [vmem:[%s1949 + $0x78] sm:$0xff]
  %v1966 = vld [vmem:[%s1949 + $0x80] sm:$0xff]
  %v1967 = vld [vmem:[%s1949 + $0x88] sm:$0xff]
  %v1968 = vld [vmem:[%s1949 + $0x90] sm:$0xff]
  %v1969 = vld [vmem:[%s1949 + $0x98] sm:$0xff]
  %v1970 = vld [vmem:[%s1949 + $0xa0] sm:$0xff]
  %v1971 = vld [vmem:[%s1949 + $0xa8] sm:$0xff]
  %v1972 = vld [vmem:[%s1949 + $0xb0] sm:$0xff]
  %v1973 = vld [vmem:[%s1949 + $0xb8] sm:$0xff]
  %v1974 = vld [vmem:[%s1949 + $0xc0] sm:$0xff]
  %v1975 = vld [vmem:[%s1949 + $0xc8] sm:$0xff]
  %v1976 = vld [vmem:[%s1949 + $0xd0] sm:$0xff]
  %v1977 = vld [vmem:[%s1949 + $0xd8] sm:$0x7]
  %v1979 = vsel %vm1737, %v1674, 0
  %v1982 = vsel %vm1060, %v1977, 0
  %1984 = vmatprep.subr.mxu0 0.0
  %1985 = vmatpush1.msra.mxu0 %v1950
  %1986 = vmatprep.subr.mxu0 0.0
  %1987 = vmatpush1.msra.mxu0 %v1951
  %1988 = vmatprep.subr.mxu0 0.0
  %1989 = vmatpush1.msra.mxu0 %v1952
  %1990 = vmatprep.subr.mxu0 0.0
  %1991 = vmatpush1.msra.mxu0 %v1953
  %1992 = vmatprep.subr.mxu0 0.0
  %1993 = vmatpush1.msra.mxu0 %v1954
  %1994 = vmatprep.subr.mxu0 0.0
  %1995 = vmatpush1.msra.mxu0 %v1955
  %1996 = vmatprep.subr.mxu0 0.0
  %1997 = vmatpush1.msra.mxu0 %v1956
  %1998 = vmatprep.subr.mxu0 0.0
  %1999 = vmatpush1.msra.mxu0 %v1957
  %2000 = vmatprep.subr.mxu0 0.0
  %2001 = vmatpush1.msra.mxu0 %v1958
  %2002 = vmatprep.subr.mxu0 0.0
  %2003 = vmatpush1.msra.mxu0 %v1959
  %2004 = vmatprep.subr.mxu0 0.0
  %2005 = vmatpush1.msra.mxu0 %v1960
  %2006 = vmatprep.subr.mxu0 0.0
  %2007 = vmatpush1.msra.mxu0 %v1961
  %2008 = vmatprep.subr.mxu0 0.0
  %2009 = vmatpush1.msra.mxu0 %v1962
  %2010 = vmatprep.subr.mxu0 0.0
  %2011 = vmatpush1.msra.mxu0 %v1963
  %2012 = vmatprep.subr.mxu0 0.0
  %2013 = vmatpush1.msra.mxu0 %v1964
  %2014 = vmatprep.subr.mxu0 0.0
  %2015 = vmatpush1.msra.mxu0 %v1965
  %2016 = vmatprep.subr.mxu0 0.0
  %2017 = vmatpush1.msra.mxu0 %v1966
  %2018 = vmatprep.subr.mxu0 0.0
  %2019 = vmatpush1.msra.mxu0 %v1967
  %2020 = vmatprep.subr.mxu0 0.0
  %2021 = vmatpush1.msra.mxu0 %v1968
  %2022 = vmatprep.subr.mxu0 0.0
  %2023 = vmatpush1.msra.mxu0 %v1969
  %2024 = vmatprep.subr.mxu0 0.0
  %2025 = vmatpush1.msra.mxu0 %v1970
  %2026 = vmatprep.subr.mxu0 0.0
  %2027 = vmatpush1.msra.mxu0 %v1971
  %2028 = vmatprep.subr.mxu0 0.0
  %2029 = vmatpush1.msra.mxu0 %v1972
  %2030 = vmatprep.subr.mxu0 0.0
  %2031 = vmatpush1.msra.mxu0 %v1973
  %2032 = vmatprep.subr.mxu0 0.0
  %2033 = vmatpush1.msra.mxu0 %v1974
  %2034 = vmatprep.subr.mxu0 0.0
  %2035 = vmatpush1.msra.mxu0 %v1975
  %2036 = vmatprep.subr.mxu0 0.0
  %2037 = vmatpush1.msra.mxu0 %v1976
  %2038 = vmatprep.subr.mxu0 0.0
  %2039 = vmatpush1.msra.mxu0 %v1982
  %2040 = vmatprep.subr.mxu0 0.0
  %2041 = vmatpush1.msra.mxu0 0.0
  %2042 = vmatprep.subr.mxu0 0.0
  %2043 = vmatpush1.msra.mxu0 0.0
  %2044 = vmatprep.subr.mxu0 0.0
  %2045 = vmatpush1.msra.mxu0 0.0
  %2046 = vmatprep.subr.mxu0 0.0
  %2047 = vmatpush1.msra.mxu0 0.0
  %2048 = vmatprep.mubr.f32.mxu0 %v1979
  %2049 = vmatmul.mubr.f32.gmra.mrb[0].mxu0 %v1673
  %v2050 = vpop.f32.mrb[0].mxu0
  %v2051 = vadd.f32 0.0, %v2050
  %v2052 = vpop.f32.mrb[0].mxu0
  %2053 = vdwg.mxu0
  %v2054 = vld [vmem:[%s1 + $0xa38] ss:$0 sm:$0xff]
  %v2055 = vsel %vm1737, %v1672, 0
  %v2058 = vsel %vm1060, %v1702, 0
  %2060 = vmatprep.subr.mxu0 0.0
  %2061 = vmatpush1.msra.mxu0 %v1675
  %2062 = vmatprep.subr.mxu0 0.0
  %2063 = vmatpush1.msra.mxu0 %v1676
  %2064 = vmatprep.subr.mxu0 0.0
  %2065 = vmatpush1.msra.mxu0 %v1677
  %2066 = vmatprep.subr.mxu0 0.0
  %2067 = vmatpush1.msra.mxu0 %v1678
  %2068 = vmatprep.subr.mxu0 0.0
  %2069 = vmatpush1.msra.mxu0 %v1679
  %2070 = vmatprep.subr.mxu0 0.0
  %2071 = vmatpush1.msra.mxu0 %v1680
  %2072 = vmatprep.subr.mxu0 0.0
  %2073 = vmatpush1.msra.mxu0 %v1681
  %2074 = vmatprep.subr.mxu0 0.0
  %2075 = vmatpush1.msra.mxu0 %v1682
  %2076 = vmatprep.subr.mxu0 0.0
  %2077 = vmatpush1.msra.mxu0 %v1683
  %2078 = vmatprep.subr.mxu0 0.0
  %2079 = vmatpush1.msra.mxu0 %v1684
  %2080 = vmatprep.subr.mxu0 0.0
  %2081 = vmatpush1.msra.mxu0 %v1685
  %2082 = vmatprep.subr.mxu0 0.0
  %2083 = vmatpush1.msra.mxu0 %v1686
  %2084 = vmatprep.subr.mxu0 0.0
  %2085 = vmatpush1.msra.mxu0 %v1687
  %2086 = vmatprep.subr.mxu0 0.0
  %2087 = vmatpush1.msra.mxu0 %v1688
  %2088 = vmatprep.subr.mxu0 0.0
  %2089 = vmatpush1.msra.mxu0 %v1689
  %2090 = vmatprep.subr.mxu0 0.0
  %2091 = vmatpush1.msra.mxu0 %v1690
  %2092 = vmatprep.subr.mxu0 0.0
  %2093 = vmatpush1.msra.mxu0 %v1691
  %2094 = vmatprep.subr.mxu0 0.0
  %2095 = vmatpush1.msra.mxu0 %v1692
  %2096 = vmatprep.subr.mxu0 0.0
  %2097 = vmatpush1.msra.mxu0 %v1693
  %2098 = vmatprep.subr.mxu0 0.0
  %2099 = vmatpush1.msra.mxu0 %v1694
  %2100 = vmatprep.subr.mxu0 0.0
  %2101 = vmatpush1.msra.mxu0 %v1695
  %2102 = vmatprep.subr.mxu0 0.0
  %2103 = vmatpush1.msra.mxu0 %v1696
  %2104 = vmatprep.subr.mxu0 0.0
  %2105 = vmatpush1.msra.mxu0 %v1697
  %2106 = vmatprep.subr.mxu0 0.0
  %2107 = vmatpush1.msra.mxu0 %v1698
  %2108 = vmatprep.subr.mxu0 0.0
  %2109 = vmatpush1.msra.mxu0 %v1699
  %2110 = vmatprep.subr.mxu0 0.0
  %2111 = vmatpush1.msra.mxu0 %v1700
  %2112 = vmatprep.subr.mxu0 0.0
  %2113 = vmatpush1.msra.mxu0 %v1701
  %2114 = vmatprep.subr.mxu0 0.0
  %2115 = vmatpush1.msra.mxu0 %v2058
  %2116 = vmatprep.subr.mxu0 0.0
  %2117 = vmatpush1.msra.mxu0 0.0
  %2118 = vmatprep.subr.mxu0 0.0
  %2119 = vmatpush1.msra.mxu0 0.0
  %2120 = vmatprep.subr.mxu0 0.0
  %2121 = vmatpush1.msra.mxu0 0.0
  %2122 = vmatprep.subr.mxu0 0.0
  %2123 = vmatpush1.msra.mxu0 0.0
  %2124 = vmatprep.mubr.f32.mxu0 %v2055
  %2125 = vmatmul.mubr.f32.gmra.mrb[0].mxu0 %v1671
  %v2126 = vpop.f32.mrb[0].mxu0
  %v2127 = vadd.f32 %v1810, %v2126
  %v2128 = vpop.f32.mrb[0].mxu0
  %2129 = vdwg.mxu0
  %v2130 = vrot.slane %v1671, 4
  %v2131 = vrot.slane %v1672, 4
  %v2133 = vsel %vm1737, %v2131, 0
  %v2136 = vsel %vm1060, %v1841, 0
  %2138 = vmatprep.subr.mxu0 0.0
  %2139 = vmatpush1.msra.mxu0 %v1814
  %2140 = vmatprep.subr.mxu0 0.0
  %2141 = vmatpush1.msra.mxu0 %v1815
  %2142 = vmatprep.subr.mxu0 0.0
  %2143 = vmatpush1.msra.mxu0 %v1816
  %2144 = vmatprep.subr.mxu0 0.0
  %2145 = vmatpush1.msra.mxu0 %v1817
  %2146 = vmatprep.subr.mxu0 0.0
  %2147 = vmatpush1.msra.mxu0 %v1818
  %2148 = vmatprep.subr.mxu0 0.0
  %2149 = vmatpush1.msra.mxu0 %v1819
  %2150 = vmatprep.subr.mxu0 0.0
  %2151 = vmatpush1.msra.mxu0 %v1820
  %2152 = vmatprep.subr.mxu0 0.0
  %2153 = vmatpush1.msra.mxu0 %v1821
  %2154 = vmatprep.subr.mxu0 0.0
  %2155 = vmatpush1.msra.mxu0 %v1822
  %2156 = vmatprep.subr.mxu0 0.0
  %2157 = vmatpush1.msra.mxu0 %v1823
  %2158 = vmatprep.subr.mxu0 0.0
  %2159 = vmatpush1.msra.mxu0 %v1824
  %2160 = vmatprep.subr.mxu0 0.0
  %2161 = vmatpush1.msra.mxu0 %v1825
  %2162 = vmatprep.subr.mxu0 0.0
  %2163 = vmatpush1.msra.mxu0 %v1826
  %2164 = vmatprep.subr.mxu0 0.0
  %2165 = vmatpush1.msra.mxu0 %v1827
  %2166 = vmatprep.subr.mxu0 0.0
  %2167 = vmatpush1.msra.mxu0 %v1828
  %2168 = vmatprep.subr.mxu0 0.0
  %2169 = vmatpush1.msra.mxu0 %v1829
  %2170 = vmatprep.subr.mxu0 0.0
  %2171 = vmatpush1.msra.mxu0 %v1830
  %2172 = vmatprep.subr.mxu0 0.0
  %2173 = vmatpush1.msra.mxu0 %v1831
  %2174 = vmatprep.subr.mxu0 0.0
  %2175 = vmatpush1.msra.mxu0 %v1832
  %2176 = vmatprep.subr.mxu0 0.0
  %2177 = vmatpush1.msra.mxu0 %v1833
  %2178 = vmatprep.subr.mxu0 0.0
  %2179 = vmatpush1.msra.mxu0 %v1834
  %2180 = vmatprep.subr.mxu0 0.0
  %2181 = vmatpush1.msra.mxu0 %v1835
  %2182 = vmatprep.subr.mxu0 0.0
  %2183 = vmatpush1.msra.mxu0 %v1836
  %2184 = vmatprep.subr.mxu0 0.0
  %2185 = vmatpush1.msra.mxu0 %v1837
  %2186 = vmatprep.subr.mxu0 0.0
  %2187 = vmatpush1.msra.mxu0 %v1838
  %2188 = vmatprep.subr.mxu0 0.0
  %2189 = vmatpush1.msra.mxu0 %v1839
  %2190 = vmatprep.subr.mxu0 0.0
  %2191 = vmatpush1.msra.mxu0 %v1840
  %2192 = vmatprep.subr.mxu0 0.0
  %2193 = vmatpush1.msra.mxu0 %v2136
  %2194 = vmatprep.subr.mxu0 0.0
  %2195 = vmatpush1.msra.mxu0 0.0
  %2196 = vmatprep.subr.mxu0 0.0
  %2197 = vmatpush1.msra.mxu0 0.0
  %2198 = vmatprep.subr.mxu0 0.0
  %2199 = vmatpush1.msra.mxu0 0.0
  %2200 = vmatprep.subr.mxu0 0.0
  %2201 = vmatpush1.msra.mxu0 0.0
  %2202 = vmatprep.mubr.f32.mxu0 %v2133
  %2203 = vmatmul.mubr.f32.gmra.mrb[0].mxu0 %v2130
  %v2204 = vpop.f32.mrb[0].mxu0
  %v2205 = vadd.f32 %v1946, %v2204
  %v2206 = vpop.f32.mrb[0].mxu0
  %2207 = vdwg.mxu0
  %v2208 = vadd.f32 %v2127, %v2205
  %v2209 = vadd.f32 %v2208, %v2051
  %v2210 = vadd.f32 %v2054, %v2209
  %v2211 = vlaneseq
  %v2212 = vand.u32 %v2211, 127
  %vm2213 = vcmask 73728
  %v2214 = vsel %vm2213, %v2210, -inf
  %2215 = vmax.xlane.f32.xlu0 %v2214
  %v2216 = vpop.xlane.xlu0 %2215
  %vm2217 = vcmask 155728
  %v2218 = vsel %vm2217, %v2210, -inf
  %2219 = vmax.xlane.f32.xlu0 %v2218
  %v2220 = vpop.xlane.xlu0 %2219
  %vm2221 = vcmp.lt.s32.totalorder %v2212, 10
  %v2222 = vsel %vm2221, %v2216, %v2220
  %v2223 = vsub.f32 %v2210, %v2222
  %v2224 = vmul.f32 %v2223, 1.442695
  %v2225 = vpow.pop %v2224
  %v2226 = vsel %vm2213, %v2225, 0.0
  %2227 = vadd.xlane.f32.xlu0 %v2226
  %v2228 = vpop.xlane.xlu0 %2227
  %2230 = vrot.lane.b32.xlu0 %v2225, 118
  %v2231 = vpop.permute.xlu0 %2230
  %v2233 = vsel %vm2213, %v2231, 0.0
  %2234 = vadd.xlane.f32.xlu0 %v2233
  %v2235 = vpop.xlane.xlu0 %2234
  %v2236 = vsel %vm2221, %v2228, %v2235
  %v2237 = vrcp.pop %v2236
  %v2238 = vmul.f32 %v2225, %v2237
  %2239 = vst [vmem:[%s3] sm:$0x1] %v2238
  // Predicated region
  $region14: #{classifier_forward.1} parent=0 // pred_check
    _
  $region15: #{classifier_forward.1} parent=0 // pred_check_branch
    %2241 = sbr.rel (0) target = $region17
  $region16: #{classifier_forward.1} parent=0 // pred_region
    _
  $region17: #{classifier_forward.1} parent=0 // pred_fallthru
    _
  // Predicated region
  $region18: #{classifier_forward.1} parent=0 // pred_check
    _
  $region19: #{classifier_forward.1} parent=0 // pred_check_branch
    %2243 = sbr.rel (0) target = $region21
  $region20: #{classifier_forward.1} parent=0 // pred_region
    _
  $region21: #{classifier_forward.1} parent=0 // pred_fallthru
    _

</llo_original>
